<compile_context>
chip_gen: v5e
topology: v5e:2x2
jax: 0.10.0
libtpu: 0.0.40
codegen_flags: <defaults>
</compile_context>

<pallas_src>
import math

import numpy as np
import jax
import jax.numpy as jnp
from jax.experimental import pallas as pl
from jax.experimental.pallas import tpu as pltpu


# ----------------------------------------------------------------------------
# In-kernel conv block:  out = sum_k S[k] @ A @ T[k]  (+ bias) (+ ReLU)
# ----------------------------------------------------------------------------
def _conv_block(a, s, t, bias=None, relu=True):
    """a: (Hin, Cin*Win) f32; s: (3*Ho, Hin) bf16; t: (3*Cin*Win, Cout*Wo) bf16."""
    ho = s.shape[0] // 3
    wc_in = t.shape[0] // 3
    wc_out = t.shape[1]
    # Row selection for the 3 vertical taps (exact: S is 0/1).
    rows = jnp.dot(s, a.astype(jnp.bfloat16), preferred_element_type=jnp.float32)
    rows = rows.astype(jnp.bfloat16)
    acc = jnp.zeros((ho, wc_out), jnp.float32)
    for k in range(3):                                        # unrolled: 3 small MXU dots
        acc = acc + jnp.dot(rows[k * ho:(k + 1) * ho, :],
                            t[k * wc_in:(k + 1) * wc_in, :],
                            preferred_element_type=jnp.float32)
    if bias is not None:
        acc = acc + bias
    if relu:
        acc = jnp.maximum(acc, 0.0)
    return acc


def _hourglass_kernel(x_ref, em1_ref, em2_ref,
                      s1_ref, t1_ref, s2_ref, t2_ref,
                      s3_ref, t3_ref, s4_ref, t4_ref,
                      s5_ref, t5_ref, b5_ref,
                      s6_ref, t6_ref, b6_ref,
                      out_ref, xcat_ref, xpcat_ref):
    x = x_ref[0]                                   # (H,  C*W)
    em1 = em1_ref[0]                               # (H/2, C*W/2)
    em2 = em2_ref[0]                               # (H/4, 2C*W/4)

    a = _conv_block(x, s1_ref[...], t1_ref[...])                      # conv1 + ReLU
    a = _conv_block(a, s2_ref[...], t2_ref[...])                      # conv2 + F.relu
    xcat = jnp.concatenate([a, em1], axis=-1)                         # channel cat
    xcat_ref[0] = xcat

    a = _conv_block(xcat, s3_ref[...], t3_ref[...])                   # conv3 + ReLU
    a = _conv_block(a, s4_ref[...], t4_ref[...])                      # conv4 + F.relu
    xpcat = jnp.concatenate([a, em2], axis=-1)                        # channel cat
    xpcat_ref[0] = xpcat

    a = _conv_block(xpcat, s5_ref[...], t5_ref[...], bias=b5_ref[...])          # deconv5+BN+ReLU
    a = _conv_block(a, s6_ref[...], t6_ref[...], bias=b6_ref[...], relu=False)  # deconv6+BN
    out_ref[0] = a


# ----------------------------------------------------------------------------
# Layout glue:  NCHW  <->  (N, H, C*W) slabs
# ----------------------------------------------------------------------------
def _to_rows(t_nchw):
    n, c, h, w = t_nchw.shape
    return jnp.transpose(t_nchw, (0, 2, 1, 3)).reshape(n, h, c * w)


def _from_rows(t_rows, c):
    n, h, cw = t_rows.shape
    return jnp.transpose(t_rows.reshape(n, h, c, cw // c), (0, 2, 1, 3))


def hourglass1_forward(x_nchw, em1_nchw, em2_nchw, params):
    N, C, H, W = x_nchw.shape
    H2, W2, H4, W4 = H // 2, W // 2, H // 4, W // 4

    x_rows = _to_rows(x_nchw)
    em1_rows = _to_rows(em1_nchw)
    em2_rows = _to_rows(em2_nchw)
    consts = params["consts"]

    def batch_spec(h, wc):
        return pl.BlockSpec((1, h, wc), lambda b: (b, 0, 0))

    in_specs = ([batch_spec(H, C * W),
                 batch_spec(H2, C * W2),
                 batch_spec(H4, 2 * C * W4)]
                + [pl.BlockSpec(c.shape, lambda b: (0, 0)) for c in consts])
    out_specs = [batch_spec(H, C * W),
                 batch_spec(H2, 2 * C * W2),
                 batch_spec(H4, 4 * C * W4)]
    out_shape = [jax.ShapeDtypeStruct((N, H, C * W), jnp.float32),
                 jax.ShapeDtypeStruct((N, H2, 2 * C * W2), jnp.float32),
                 jax.ShapeDtypeStruct((N, H4, 4 * C * W4), jnp.float32)]

    out_rows, xcat_rows, xpcat_rows = pl.pallas_call(
        _hourglass_kernel,
        out_shape=out_shape,
        grid=(N,),
        in_specs=in_specs,
        out_specs=out_specs,
        compiler_params=pltpu.CompilerParams(dimension_semantics=("parallel",)),
    )(x_rows, em1_rows, em2_rows, *consts)

    return (_from_rows(out_rows, C),
            _from_rows(xcat_rows, 2 * C),
            _from_rows(xpcat_rows, 4 * C))


# ----------------------------------------------------------------------------
# Precomputed S / T matrices (built once at init; weights folded in)
# ----------------------------------------------------------------------------
def _conv_st(w_torch, hin, win, stride, scale=None):
    """3x3 conv, pad=1.  w_torch: (Cout, Cin, 3, 3)."""
    cout, cin = int(w_torch.shape[0]), int(w_torch.shape[1])
    ho = (hin + 2 - 3) // stride + 1
    wo = (win + 2 - 3) // stride + 1
    yo = np.arange(ho)[:, None]
    yi = np.arange(hin)[None, :]
    s = np.stack([(yi == stride * yo + dy - 1) for dy in range(3)], 0).astype(np.float32)
    xi = np.arange(win)[:, None]
    xo = np.arange(wo)[None, :]
    xm = np.stack([(xi == stride * xo + dx - 1) for dx in range(3)], 0).astype(np.float32)
    w_perm = jnp.transpose(w_torch, (2, 3, 1, 0))                 # (dy, dx, ci, co)
    t = jnp.einsum('ydic,dab->yiacb', w_perm, jnp.asarray(xm))    # (3, ci, xi, co, xo)
    if scale is not None:
        t = t * scale[None, None, None, :, None]
    s2 = jnp.asarray(s.reshape(3 * ho, hin), jnp.bfloat16)
    t2 = t.reshape(3 * cin * win, cout * wo).astype(jnp.bfloat16)
    return s2, t2


def _deconv_st(w_torch, hin, win, scale=None):
    """ConvTranspose2d(k=3, stride=2, pad=1, output_pad=1).  w_torch: (Cin, Cout, 3, 3)."""
    cin, cout = int(w_torch.shape[0]), int(w_torch.shape[1])
    ho, wo = 2 * hin, 2 * win
    Y = np.arange(ho)[:, None]
    y = np.arange(hin)[None, :]
    s = np.stack([(2 * y + kh - 1 == Y) for kh in range(3)], 0).astype(np.float32)
    x = np.arange(win)[:, None]
    X = np.arange(wo)[None, :]
    xm = np.stack([(2 * x + kw - 1 == X) for kw in range(3)], 0).astype(np.float32)
    w_perm = jnp.transpose(w_torch, (2, 3, 0, 1))                 # (kh, kw, ci, co)
    t = jnp.einsum('ydic,dab->yiacb', w_perm, jnp.asarray(xm))
    if scale is not None:
        t = t * scale[None, None, None, :, None]
    s2 = jnp.asarray(s.reshape(3 * ho, hin), jnp.bfloat16)
    t2 = t.reshape(3 * cin * win, cout * wo).astype(jnp.bfloat16)
    return s2, t2


def init_params(key, C, H, W, eps=1e-5):
    ks = jax.random.split(key, 8)

    def conv_w(k, cin, cout):
        return jax.random.normal(k, (cout, cin, 3, 3), jnp.float32) / (3.0 * math.sqrt(cin))

    def deconv_w(k, cin, cout):
        return jax.random.normal(k, (cin, cout, 3, 3), jnp.float32) / (3.0 * math.sqrt(cin))

    def bn(k, c):
        kg, kb, km, kv = jax.random.split(k, 4)
        gamma = 1.0 + 0.1 * jax.random.normal(kg, (c,), jnp.float32)
        beta = 0.1 * jax.random.normal(kb, (c,), jnp.float32)
        mean = 0.1 * jax.random.normal(km, (c,), jnp.float32)
        var = 0.5 + jnp.abs(jax.random.normal(kv, (c,), jnp.float32))
        scale = gamma / jnp.sqrt(var + eps)
        bias = beta - mean * scale
        return scale, bias

    raw = {
        "w1": conv_w(ks[0], C, C),
        "w2": conv_w(ks[1], C, C),
        "w3": conv_w(ks[2], 2 * C, 2 * C),
        "w4": conv_w(ks[3], 2 * C, 2 * C),
        "w5": deconv_w(ks[4], 4 * C, 2 * C),
        "w6": deconv_w(ks[5], 2 * C, C),
    }
    # TODO(synk): nn.BatchNorm2d is modelled in eval mode (running-stats affine);
    # PyTorch's default train-mode batch statistics are not reproduced.
    s5, b5 = bn(ks[6], 2 * C)
    s6, b6 = bn(ks[7], C)
    raw["s5"], raw["b5"], raw["s6"], raw["b6"] = s5, b5, s6, b6

    H2, W2, H4, W4 = H // 2, W // 2, H // 4, W // 4
    S1, T1 = _conv_st(raw["w1"], H, W, stride=2)
    S2, T2 = _conv_st(raw["w2"], H2, W2, stride=1)
    S3, T3 = _conv_st(raw["w3"], H2, W2, stride=2)
    S4, T4 = _conv_st(raw["w4"], H4, W4, stride=1)
    S5, T5 = _deconv_st(raw["w5"], H4, W4, scale=s5)      # BN scale folded into weights
    S6, T6 = _deconv_st(raw["w6"], H2, W2, scale=s6)
    b5e = jnp.repeat(b5, W2).reshape(1, 2 * C * W2).astype(jnp.float32)
    b6e = jnp.repeat(b6, W).reshape(1, C * W).astype(jnp.float32)

    params = {"consts": (S1, T1, S2, T2, S3, T3, S4, T4, S5, T5, b5e, S6, T6, b6e)}
    return params, raw


# ----------------------------------------------------------------------------
# Pure-JAX reference (lax convs, f32) for correctness checking
# ----------------------------------------------------------------------------
def _nchw_to_nhwc(t):
    return jnp.transpose(t, (0, 2, 3, 1))


def _nhwc_to_nchw(t):
    return jnp.transpose(t, (0, 3, 1, 2))


def _ref_conv(x, w_torch, stride):
    return jax.lax.conv_general_dilated(
        x, jnp.transpose(w_torch, (2, 3, 1, 0)),
        window_strides=(stride, stride), padding=((1, 1), (1, 1)),
        dimension_numbers=("NHWC", "HWIO", "NHWC"))


def _ref_deconv(x, w_torch_t):
    w_eq = jnp.transpose(jnp.flip(w_torch_t, (2, 3)), (2, 3, 0, 1))
    return jax.lax.conv_general_dilated(
        x, w_eq, window_strides=(1, 1), padding=((1, 2), (1, 2)),
        lhs_dilation=(2, 2), dimension_numbers=("NHWC", "HWIO", "NHWC"))


def ref_forward(x_nchw, em1_nchw, em2_nchw, raw):
    x = _nchw_to_nhwc(x_nchw)
    em1 = _nchw_to_nhwc(em1_nchw)
    em2 = _nchw_to_nhwc(em2_nchw)
    h = jnp.maximum(_ref_conv(x, raw["w1"], 2), 0.0)
    h = jnp.maximum(_ref_conv(h, raw["w2"], 1), 0.0)
    xcat = jnp.concatenate([h, em1], axis=-1)
    hp = jnp.maximum(_ref_conv(xcat, raw["w3"], 2), 0.0)
    hp = jnp.maximum(_ref_conv(hp, raw["w4"], 1), 0.0)
    xpcat = jnp.concatenate([hp, em2], axis=-1)
    o = jnp.maximum(_ref_deconv(xpcat, raw["w5"]) * raw["s5"] + raw["b5"], 0.0)
    o = _ref_deconv(o, raw["w6"]) * raw["s6"] + raw["b6"]
    return _nhwc_to_nchw(o), _nhwc_to_nchw(xcat), _nhwc_to_nchw(xpcat)


# ----------------------------------------------------------------------------
if __name__ == "__main__":
    key = jax.random.PRNGKey(0)
    k_x, k_e1, k_e2, k_p = jax.random.split(key, 4)

    N, C, H, W = 2, 4, 16, 16
    x = jax.random.normal(k_x, (N, C, H, W), jnp.float32)            # NCHW
    em1 = jax.random.normal(k_e1, (N, C, H // 2, W // 2), jnp.float32)
    em2 = jax.random.normal(k_e2, (N, 2 * C, H // 4, W // 4), jnp.float32)

    params, raw = init_params(k_p, C, H, W)

    fwd = jax.jit(hourglass1_forward)
    out, x_cat, x_prime = fwd(x, em1, em2, params)
    jax.block_until_ready((out, x_cat, x_prime))

    assert out.shape == (N, C, H, W)
    assert x_cat.shape == (N, 2 * C, H // 2, W // 2)
    assert x_prime.shape == (N, 4 * C, H // 4, W // 4)

    r_out, r_x, r_xp = ref_forward(x, em1, em2, raw)
    assert jnp.allclose(x_cat, r_x, atol=3e-2, rtol=3e-2)
    assert jnp.allclose(x_prime, r_xp, atol=3e-2, rtol=3e-2)
    assert jnp.allclose(out, r_out, atol=3e-2, rtol=3e-2)

    print("KERNEL_OK")
</pallas_src>

<mosaic_0001>
module attributes {stable_mosaic.version = 11 : i64} {
  func.func @_hourglass_kernel(%arg0: i32, %arg1: memref<1x16x64xf32, #tpu.memory_space<vmem>>, %arg2: memref<1x8x32xf32, #tpu.memory_space<vmem>>, %arg3: memref<1x4x32xf32, #tpu.memory_space<vmem>>, %arg4: memref<24x16xbf16, #tpu.memory_space<vmem>>, %arg5: memref<192x32xbf16, #tpu.memory_space<vmem>>, %arg6: memref<24x8xbf16, #tpu.memory_space<vmem>>, %arg7: memref<96x32xbf16, #tpu.memory_space<vmem>>, %arg8: memref<12x8xbf16, #tpu.memory_space<vmem>>, %arg9: memref<192x32xbf16, #tpu.memory_space<vmem>>, %arg10: memref<12x4xbf16, #tpu.memory_space<vmem>>, %arg11: memref<96x32xbf16, #tpu.memory_space<vmem>>, %arg12: memref<24x4xbf16, #tpu.memory_space<vmem>>, %arg13: memref<192x64xbf16, #tpu.memory_space<vmem>>, %arg14: memref<1x64xf32, #tpu.memory_space<vmem>>, %arg15: memref<48x8xbf16, #tpu.memory_space<vmem>>, %arg16: memref<192x64xbf16, #tpu.memory_space<vmem>>, %arg17: memref<1x64xf32, #tpu.memory_space<vmem>>, %arg18: memref<1x16x64xf32, #tpu.memory_space<vmem>>, %arg19: memref<1x8x64xf32, #tpu.memory_space<vmem>>, %arg20: memref<1x4x64xf32, #tpu.memory_space<vmem>>) attributes {dimension_semantics = [#tpu.dimension_semantics<parallel>], iteration_bounds = array<i64: 2>, scalar_prefetch = 0 : i64, scratch_operands = 0 : i64, tpu.core_type = #tpu.core_type<tc>, window_params = [{transform_indices = @transform_0, window_bounds = array<i64: 1, 16, 64>}, {transform_indices = @transform_1, window_bounds = array<i64: 1, 8, 32>}, {transform_indices = @transform_2, window_bounds = array<i64: 1, 4, 32>}, {pipeline_mode = #tpu.pipeline_mode<synchronous>, transform_indices = @transform_3, window_bounds = array<i64: 24, 16>}, {pipeline_mode = #tpu.pipeline_mode<synchronous>, transform_indices = @transform_4, window_bounds = array<i64: 192, 32>}, {pipeline_mode = #tpu.pipeline_mode<synchronous>, transform_indices = @transform_5, window_bounds = array<i64: 24, 8>}, {pipeline_mode = #tpu.pipeline_mode<synchronous>, transform_indices = @transform_6, window_bounds = array<i64: 96, 32>}, {pipeline_mode = #tpu.pipeline_mode<synchronous>, transform_indices = @transform_7, window_bounds = array<i64: 12, 8>}, {pipeline_mode = #tpu.pipeline_mode<synchronous>, transform_indices = @transform_8, window_bounds = array<i64: 192, 32>}, {pipeline_mode = #tpu.pipeline_mode<synchronous>, transform_indices = @transform_9, window_bounds = array<i64: 12, 4>}, {pipeline_mode = #tpu.pipeline_mode<synchronous>, transform_indices = @transform_10, window_bounds = array<i64: 96, 32>}, {pipeline_mode = #tpu.pipeline_mode<synchronous>, transform_indices = @transform_11, window_bounds = array<i64: 24, 4>}, {pipeline_mode = #tpu.pipeline_mode<synchronous>, transform_indices = @transform_12, window_bounds = array<i64: 192, 64>}, {pipeline_mode = #tpu.pipeline_mode<synchronous>, transform_indices = @transform_13, window_bounds = array<i64: 1, 64>}, {pipeline_mode = #tpu.pipeline_mode<synchronous>, transform_indices = @transform_14, window_bounds = array<i64: 48, 8>}, {pipeline_mode = #tpu.pipeline_mode<synchronous>, transform_indices = @transform_15, window_bounds = array<i64: 192, 64>}, {pipeline_mode = #tpu.pipeline_mode<synchronous>, transform_indices = @transform_16, window_bounds = array<i64: 1, 64>}, {transform_indices = @transform_17, window_bounds = array<i64: 1, 16, 64>}, {transform_indices = @transform_18, window_bounds = array<i64: 1, 8, 64>}, {transform_indices = @transform_19, window_bounds = array<i64: 1, 4, 64>}]} {
    %c0 = arith.constant 0 : index
    %c0_0 = arith.constant 0 : index
    %c0_1 = arith.constant 0 : index
    %0 = vector.load %arg1[%c0, %c0_0, %c0_1] : memref<1x16x64xf32, #tpu.memory_space<vmem>>, vector<1x16x64xf32>
    %1 = vector.shape_cast %0 : vector<1x16x64xf32> to vector<16x64xf32>
    %c0_2 = arith.constant 0 : index
    %c0_3 = arith.constant 0 : index
    %c0_4 = arith.constant 0 : index
    %2 = vector.load %arg2[%c0_2, %c0_3, %c0_4] : memref<1x8x32xf32, #tpu.memory_space<vmem>>, vector<1x8x32xf32>
    %3 = vector.shape_cast %2 : vector<1x8x32xf32> to vector<8x32xf32>
    %c0_5 = arith.constant 0 : index
    %c0_6 = arith.constant 0 : index
    %c0_7 = arith.constant 0 : index
    %4 = vector.load %arg3[%c0_5, %c0_6, %c0_7] : memref<1x4x32xf32, #tpu.memory_space<vmem>>, vector<1x4x32xf32>
    %5 = vector.shape_cast %4 : vector<1x4x32xf32> to vector<4x32xf32>
    %c0_8 = arith.constant 0 : index
    %c0_9 = arith.constant 0 : index
    %6 = vector.load %arg4[%c0_8, %c0_9] : memref<24x16xbf16, #tpu.memory_space<vmem>>, vector<24x16xbf16>
    %c0_10 = arith.constant 0 : index
    %c0_11 = arith.constant 0 : index
    %7 = vector.load %arg5[%c0_10, %c0_11] : memref<192x32xbf16, #tpu.memory_space<vmem>>, vector<192x32xbf16>
    %8 = arith.truncf %1 : vector<16x64xf32> to vector<16x64xbf16>
    %cst = arith.constant dense<0.000000e+00> : vector<24x64xf32>
    %9 = tpu.matmul %6, %8, %cst {dimension_numbers = #tpu.dot_dimension_numbers<[1], [0], [0], [1], [0, 0, 1, 1], [], []>} : vector<24x16xbf16>, vector<16x64xbf16>, vector<24x64xf32> -> vector<24x64xf32>
    %10 = arith.truncf %9 : vector<24x64xf32> to vector<24x64xbf16>
    %cst_12 = arith.constant 0.000000e+00 : f32
    %11 = vector.broadcast %cst_12 : f32 to vector<8x32xf32>
    %12 = vector.extract_strided_slice %10 {offsets = [0, 0], sizes = [8, 64], strides = [1, 1]} : vector<24x64xbf16> to vector<8x64xbf16>
    %13 = vector.extract_strided_slice %7 {offsets = [0, 0], sizes = [64, 32], strides = [1, 1]} : vector<192x32xbf16> to vector<64x32xbf16>
    %cst_13 = arith.constant dense<0.000000e+00> : vector<8x32xf32>
    %14 = tpu.matmul %12, %13, %cst_13 {dimension_numbers = #tpu.dot_dimension_numbers<[1], [0], [0], [1], [0, 0, 1, 1], [], []>} : vector<8x64xbf16>, vector<64x32xbf16>, vector<8x32xf32> -> vector<8x32xf32>
    %15 = arith.addf %11, %14 : vector<8x32xf32>
    %16 = vector.extract_strided_slice %10 {offsets = [8, 0], sizes = [8, 64], strides = [1, 1]} : vector<24x64xbf16> to vector<8x64xbf16>
    %17 = vector.extract_strided_slice %7 {offsets = [64, 0], sizes = [64, 32], strides = [1, 1]} : vector<192x32xbf16> to vector<64x32xbf16>
    %cst_14 = arith.constant dense<0.000000e+00> : vector<8x32xf32>
    %18 = tpu.matmul %16, %17, %cst_14 {dimension_numbers = #tpu.dot_dimension_numbers<[1], [0], [0], [1], [0, 0, 1, 1], [], []>} : vector<8x64xbf16>, vector<64x32xbf16>, vector<8x32xf32> -> vector<8x32xf32>
    %19 = arith.addf %15, %18 : vector<8x32xf32>
    %20 = vector.extract_strided_slice %10 {offsets = [16, 0], sizes = [8, 64], strides = [1, 1]} : vector<24x64xbf16> to vector<8x64xbf16>
    %21 = vector.extract_strided_slice %7 {offsets = [128, 0], sizes = [64, 32], strides = [1, 1]} : vector<192x32xbf16> to vector<64x32xbf16>
    %cst_15 = arith.constant dense<0.000000e+00> : vector<8x32xf32>
    %22 = tpu.matmul %20, %21, %cst_15 {dimension_numbers = #tpu.dot_dimension_numbers<[1], [0], [0], [1], [0, 0, 1, 1], [], []>} : vector<8x64xbf16>, vector<64x32xbf16>, vector<8x32xf32> -> vector<8x32xf32>
    %23 = arith.addf %19, %22 : vector<8x32xf32>
    %cst_16 = arith.constant 0.000000e+00 : f32
    %24 = vector.broadcast %cst_16 : f32 to vector<8x32xf32>
    %25 = arith.maximumf %23, %24 : vector<8x32xf32>
    %c0_17 = arith.constant 0 : index
    %c0_18 = arith.constant 0 : index
    %26 = vector.load %arg6[%c0_17, %c0_18] : memref<24x8xbf16, #tpu.memory_space<vmem>>, vector<24x8xbf16>
    %c0_19 = arith.constant 0 : index
    %c0_20 = arith.constant 0 : index
    %27 = vector.load %arg7[%c0_19, %c0_20] : memref<96x32xbf16, #tpu.memory_space<vmem>>, vector<96x32xbf16>
    %28 = arith.truncf %25 : vector<8x32xf32> to vector<8x32xbf16>
    %cst_21 = arith.constant dense<0.000000e+00> : vector<24x32xf32>
    %29 = tpu.matmul %26, %28, %cst_21 {dimension_numbers = #tpu.dot_dimension_numbers<[1], [0], [0], [1], [0, 0, 1, 1], [], []>} : vector<24x8xbf16>, vector<8x32xbf16>, vector<24x32xf32> -> vector<24x32xf32>
    %30 = arith.truncf %29 : vector<24x32xf32> to vector<24x32xbf16>
    %cst_22 = arith.constant 0.000000e+00 : f32
    %31 = vector.broadcast %cst_22 : f32 to vector<8x32xf32>
    %32 = vector.extract_strided_slice %30 {offsets = [0, 0], sizes = [8, 32], strides = [1, 1]} : vector<24x32xbf16> to vector<8x32xbf16>
    %33 = vector.extract_strided_slice %27 {offsets = [0, 0], sizes = [32, 32], strides = [1, 1]} : vector<96x32xbf16> to vector<32x32xbf16>
    %cst_23 = arith.constant dense<0.000000e+00> : vector<8x32xf32>
    %34 = tpu.matmul %32, %33, %cst_23 {dimension_numbers = #tpu.dot_dimension_numbers<[1], [0], [0], [1], [0, 0, 1, 1], [], []>} : vector<8x32xbf16>, vector<32x32xbf16>, vector<8x32xf32> -> vector<8x32xf32>
    %35 = arith.addf %31, %34 : vector<8x32xf32>
    %36 = vector.extract_strided_slice %30 {offsets = [8, 0], sizes = [8, 32], strides = [1, 1]} : vector<24x32xbf16> to vector<8x32xbf16>
    %37 = vector.extract_strided_slice %27 {offsets = [32, 0], sizes = [32, 32], strides = [1, 1]} : vector<96x32xbf16> to vector<32x32xbf16>
    %cst_24 = arith.constant dense<0.000000e+00> : vector<8x32xf32>
    %38 = tpu.matmul %36, %37, %cst_24 {dimension_numbers = #tpu.dot_dimension_numbers<[1], [0], [0], [1], [0, 0, 1, 1], [], []>} : vector<8x32xbf16>, vector<32x32xbf16>, vector<8x32xf32> -> vector<8x32xf32>
    %39 = arith.addf %35, %38 : vector<8x32xf32>
    %40 = vector.extract_strided_slice %30 {offsets = [16, 0], sizes = [8, 32], strides = [1, 1]} : vector<24x32xbf16> to vector<8x32xbf16>
    %41 = vector.extract_strided_slice %27 {offsets = [64, 0], sizes = [32, 32], strides = [1, 1]} : vector<96x32xbf16> to vector<32x32xbf16>
    %cst_25 = arith.constant dense<0.000000e+00> : vector<8x32xf32>
    %42 = tpu.matmul %40, %41, %cst_25 {dimension_numbers = #tpu.dot_dimension_numbers<[1], [0], [0], [1], [0, 0, 1, 1], [], []>} : vector<8x32xbf16>, vector<32x32xbf16>, vector<8x32xf32> -> vector<8x32xf32>
    %43 = arith.addf %39, %42 : vector<8x32xf32>
    %cst_26 = arith.constant 0.000000e+00 : f32
    %44 = vector.broadcast %cst_26 : f32 to vector<8x32xf32>
    %45 = arith.maximumf %43, %44 : vector<8x32xf32>
    %46 = tpu.concatenate %45, %3 in 1 : vector<8x32xf32>, vector<8x32xf32> -> vector<8x64xf32>
    %c0_27 = arith.constant 0 : index
    %c0_28 = arith.constant 0 : index
    %c0_29 = arith.constant 0 : index
    %47 = vector.load %arg19[%c0_27, %c0_28, %c0_29] : memref<1x8x64xf32, #tpu.memory_space<vmem>>, vector<1x8x64xf32>
    %48 = vector.shape_cast %47 : vector<1x8x64xf32> to vector<8x64xf32>
    %49 = vector.shape_cast %46 : vector<8x64xf32> to vector<1x8x64xf32>
    tpu.vector_store %arg19[%c0_27, %c0_28, %c0_29], %49 {strides = array<i32>} : memref<1x8x64xf32, #tpu.memory_space<vmem>>, vector<1x8x64xf32>,
    %c0_30 = arith.constant 0 : index
    %c0_31 = arith.constant 0 : index
    %50 = vector.load %arg8[%c0_30, %c0_31] : memref<12x8xbf16, #tpu.memory_space<vmem>>, vector<12x8xbf16>
    %c0_32 = arith.constant 0 : index
    %c0_33 = arith.constant 0 : index
    %51 = vector.load %arg9[%c0_32, %c0_33] : memref<192x32xbf16, #tpu.memory_space<vmem>>, vector<192x32xbf16>
    %52 = arith.truncf %46 : vector<8x64xf32> to vector<8x64xbf16>
    %cst_34 = arith.constant dense<0.000000e+00> : vector<12x64xf32>
    %53 = tpu.matmul %50, %52, %cst_34 {dimension_numbers = #tpu.dot_dimension_numbers<[1], [0], [0], [1], [0, 0, 1, 1], [], []>} : vector<12x8xbf16>, vector<8x64xbf16>, vector<12x64xf32> -> vector<12x64xf32>
    %54 = arith.truncf %53 : vector<12x64xf32> to vector<12x64xbf16>
    %cst_35 = arith.constant 0.000000e+00 : f32
    %55 = vector.broadcast %cst_35 : f32 to vector<4x32xf32>
    %56 = vector.extract_strided_slice %54 {offsets = [0, 0], sizes = [4, 64], strides = [1, 1]} : vector<12x64xbf16> to vector<4x64xbf16>
    %57 = vector.extract_strided_slice %51 {offsets = [0, 0], sizes = [64, 32], strides = [1, 1]} : vector<192x32xbf16> to vector<64x32xbf16>
    %cst_36 = arith.constant dense<0.000000e+00> : vector<4x32xf32>
    %58 = tpu.matmul %56, %57, %cst_36 {dimension_numbers = #tpu.dot_dimension_numbers<[1], [0], [0], [1], [0, 0, 1, 1], [], []>} : vector<4x64xbf16>, vector<64x32xbf16>, vector<4x32xf32> -> vector<4x32xf32>
    %59 = arith.addf %55, %58 : vector<4x32xf32>
    %60 = vector.extract_strided_slice %54 {offsets = [4, 0], sizes = [4, 64], strides = [1, 1]} : vector<12x64xbf16> to vector<4x64xbf16>
    %61 = vector.extract_strided_slice %51 {offsets = [64, 0], sizes = [64, 32], strides = [1, 1]} : vector<192x32xbf16> to vector<64x32xbf16>
    %cst_37 = arith.constant dense<0.000000e+00> : vector<4x32xf32>
    %62 = tpu.matmul %60, %61, %cst_37 {dimension_numbers = #tpu.dot_dimension_numbers<[1], [0], [0], [1], [0, 0, 1, 1], [], []>} : vector<4x64xbf16>, vector<64x32xbf16>, vector<4x32xf32> -> vector<4x32xf32>
    %63 = arith.addf %59, %62 : vector<4x32xf32>
    %64 = vector.extract_strided_slice %54 {offsets = [8, 0], sizes = [4, 64], strides = [1, 1]} : vector<12x64xbf16> to vector<4x64xbf16>
    %65 = vector.extract_strided_slice %51 {offsets = [128, 0], sizes = [64, 32], strides = [1, 1]} : vector<192x32xbf16> to vector<64x32xbf16>
    %cst_38 = arith.constant dense<0.000000e+00> : vector<4x32xf32>
    %66 = tpu.matmul %64, %65, %cst_38 {dimension_numbers = #tpu.dot_dimension_numbers<[1], [0], [0], [1], [0, 0, 1, 1], [], []>} : vector<4x64xbf16>, vector<64x32xbf16>, vector<4x32xf32> -> vector<4x32xf32>
    %67 = arith.addf %63, %66 : vector<4x32xf32>
    %cst_39 = arith.constant 0.000000e+00 : f32
    %68 = vector.broadcast %cst_39 : f32 to vector<4x32xf32>
    %69 = arith.maximumf %67, %68 : vector<4x32xf32>
    %c0_40 = arith.constant 0 : index
    %c0_41 = arith.constant 0 : index
    %70 = vector.load %arg10[%c0_40, %c0_41] : memref<12x4xbf16, #tpu.memory_space<vmem>>, vector<12x4xbf16>
    %c0_42 = arith.constant 0 : index
    %c0_43 = arith.constant 0 : index
    %71 = vector.load %arg11[%c0_42, %c0_43] : memref<96x32xbf16, #tpu.memory_space<vmem>>, vector<96x32xbf16>
    %72 = arith.truncf %69 : vector<4x32xf32> to vector<4x32xbf16>
    %cst_44 = arith.constant dense<0.000000e+00> : vector<12x32xf32>
    %73 = tpu.matmul %70, %72, %cst_44 {dimension_numbers = #tpu.dot_dimension_numbers<[1], [0], [0], [1], [0, 0, 1, 1], [], []>} : vector<12x4xbf16>, vector<4x32xbf16>, vector<12x32xf32> -> vector<12x32xf32>
    %74 = arith.truncf %73 : vector<12x32xf32> to vector<12x32xbf16>
    %cst_45 = arith.constant 0.000000e+00 : f32
    %75 = vector.broadcast %cst_45 : f32 to vector<4x32xf32>
    %76 = vector.extract_strided_slice %74 {offsets = [0, 0], sizes = [4, 32], strides = [1, 1]} : vector<12x32xbf16> to vector<4x32xbf16>
    %77 = vector.extract_strided_slice %71 {offsets = [0, 0], sizes = [32, 32], strides = [1, 1]} : vector<96x32xbf16> to vector<32x32xbf16>
    %cst_46 = arith.constant dense<0.000000e+00> : vector<4x32xf32>
    %78 = tpu.matmul %76, %77, %cst_46 {dimension_numbers = #tpu.dot_dimension_numbers<[1], [0], [0], [1], [0, 0, 1, 1], [], []>} : vector<4x32xbf16>, vector<32x32xbf16>, vector<4x32xf32> -> vector<4x32xf32>
    %79 = arith.addf %75, %78 : vector<4x32xf32>
    %80 = vector.extract_strided_slice %74 {offsets = [4, 0], sizes = [4, 32], strides = [1, 1]} : vector<12x32xbf16> to vector<4x32xbf16>
    %81 = vector.extract_strided_slice %71 {offsets = [32, 0], sizes = [32, 32], strides = [1, 1]} : vector<96x32xbf16> to vector<32x32xbf16>
    %cst_47 = arith.constant dense<0.000000e+00> : vector<4x32xf32>
    %82 = tpu.matmul %80, %81, %cst_47 {dimension_numbers = #tpu.dot_dimension_numbers<[1], [0], [0], [1], [0, 0, 1, 1], [], []>} : vector<4x32xbf16>, vector<32x32xbf16>, vector<4x32xf32> -> vector<4x32xf32>
    %83 = arith.addf %79, %82 : vector<4x32xf32>
    %84 = vector.extract_strided_slice %74 {offsets = [8, 0], sizes = [4, 32], strides = [1, 1]} : vector<12x32xbf16> to vector<4x32xbf16>
    %85 = vector.extract_strided_slice %71 {offsets = [64, 0], sizes = [32, 32], strides = [1, 1]} : vector<96x32xbf16> to vector<32x32xbf16>
    %cst_48 = arith.constant dense<0.000000e+00> : vector<4x32xf32>
    %86 = tpu.matmul %84, %85, %cst_48 {dimension_numbers = #tpu.dot_dimension_numbers<[1], [0], [0], [1], [0, 0, 1, 1], [], []>} : vector<4x32xbf16>, vector<32x32xbf16>, vector<4x32xf32> -> vector<4x32xf32>
    %87 = arith.addf %83, %86 : vector<4x32xf32>
    %cst_49 = arith.constant 0.000000e+00 : f32
    %88 = vector.broadcast %cst_49 : f32 to vector<4x32xf32>
    %89 = arith.maximumf %87, %88 : vector<4x32xf32>
    %90 = tpu.concatenate %89, %5 in 1 : vector<4x32xf32>, vector<4x32xf32> -> vector<4x64xf32>
    %c0_50 = arith.constant 0 : index
    %c0_51 = arith.constant 0 : index
    %c0_52 = arith.constant 0 : index
    %91 = vector.load %arg20[%c0_50, %c0_51, %c0_52] : memref<1x4x64xf32, #tpu.memory_space<vmem>>, vector<1x4x64xf32>
    %92 = vector.shape_cast %91 : vector<1x4x64xf32> to vector<4x64xf32>
    %93 = vector.shape_cast %90 : vector<4x64xf32> to vector<1x4x64xf32>
    tpu.vector_store %arg20[%c0_50, %c0_51, %c0_52], %93 {strides = array<i32>} : memref<1x4x64xf32, #tpu.memory_space<vmem>>, vector<1x4x64xf32>,
    %c0_53 = arith.constant 0 : index
    %c0_54 = arith.constant 0 : index
    %94 = vector.load %arg12[%c0_53, %c0_54] : memref<24x4xbf16, #tpu.memory_space<vmem>>, vector<24x4xbf16>
    %c0_55 = arith.constant 0 : index
    %c0_56 = arith.constant 0 : index
    %95 = vector.load %arg13[%c0_55, %c0_56] : memref<192x64xbf16, #tpu.memory_space<vmem>>, vector<192x64xbf16>
    %c0_57 = arith.constant 0 : index
    %c0_58 = arith.constant 0 : index
    %96 = vector.load %arg14[%c0_57, %c0_58] : memref<1x64xf32, #tpu.memory_space<vmem>>, vector<1x64xf32>
    %97 = arith.truncf %90 : vector<4x64xf32> to vector<4x64xbf16>
    %cst_59 = arith.constant dense<0.000000e+00> : vector<24x64xf32>
    %98 = tpu.matmul %94, %97, %cst_59 {dimension_numbers = #tpu.dot_dimension_numbers<[1], [0], [0], [1], [0, 0, 1, 1], [], []>} : vector<24x4xbf16>, vector<4x64xbf16>, vector<24x64xf32> -> vector<24x64xf32>
    %99 = arith.truncf %98 : vector<24x64xf32> to vector<24x64xbf16>
    %cst_60 = arith.constant 0.000000e+00 : f32
    %100 = vector.broadcast %cst_60 : f32 to vector<8x64xf32>
    %101 = vector.extract_strided_slice %99 {offsets = [0, 0], sizes = [8, 64], strides = [1, 1]} : vector<24x64xbf16> to vector<8x64xbf16>
    %102 = vector.extract_strided_slice %95 {offsets = [0, 0], sizes = [64, 64], strides = [1, 1]} : vector<192x64xbf16> to vector<64x64xbf16>
    %cst_61 = arith.constant dense<0.000000e+00> : vector<8x64xf32>
    %103 = tpu.matmul %101, %102, %cst_61 {dimension_numbers = #tpu.dot_dimension_numbers<[1], [0], [0], [1], [0, 0, 1, 1], [], []>} : vector<8x64xbf16>, vector<64x64xbf16>, vector<8x64xf32> -> vector<8x64xf32>
    %104 = arith.addf %100, %103 : vector<8x64xf32>
    %105 = vector.extract_strided_slice %99 {offsets = [8, 0], sizes = [8, 64], strides = [1, 1]} : vector<24x64xbf16> to vector<8x64xbf16>
    %106 = vector.extract_strided_slice %95 {offsets = [64, 0], sizes = [64, 64], strides = [1, 1]} : vector<192x64xbf16> to vector<64x64xbf16>
    %cst_62 = arith.constant dense<0.000000e+00> : vector<8x64xf32>
    %107 = tpu.matmul %105, %106, %cst_62 {dimension_numbers = #tpu.dot_dimension_numbers<[1], [0], [0], [1], [0, 0, 1, 1], [], []>} : vector<8x64xbf16>, vector<64x64xbf16>, vector<8x64xf32> -> vector<8x64xf32>
    %108 = arith.addf %104, %107 : vector<8x64xf32>
    %109 = vector.extract_strided_slice %99 {offsets = [16, 0], sizes = [8, 64], strides = [1, 1]} : vector<24x64xbf16> to vector<8x64xbf16>
    %110 = vector.extract_strided_slice %95 {offsets = [128, 0], sizes = [64, 64], strides = [1, 1]} : vector<192x64xbf16> to vector<64x64xbf16>
    %cst_63 = arith.constant dense<0.000000e+00> : vector<8x64xf32>
    %111 = tpu.matmul %109, %110, %cst_63 {dimension_numbers = #tpu.dot_dimension_numbers<[1], [0], [0], [1], [0, 0, 1, 1], [], []>} : vector<8x64xbf16>, vector<64x64xbf16>, vector<8x64xf32> -> vector<8x64xf32>
    %112 = arith.addf %108, %111 : vector<8x64xf32>
    %113 = vector.broadcast %96 : vector<1x64xf32> to vector<8x64xf32>
    %114 = arith.addf %112, %113 : vector<8x64xf32>
    %cst_64 = arith.constant 0.000000e+00 : f32
    %115 = vector.broadcast %cst_64 : f32 to vector<8x64xf32>
    %116 = arith.maximumf %114, %115 : vector<8x64xf32>
    %c0_65 = arith.constant 0 : index
    %c0_66 = arith.constant 0 : index
    %117 = vector.load %arg15[%c0_65, %c0_66] : memref<48x8xbf16, #tpu.memory_space<vmem>>, vector<48x8xbf16>
    %c0_67 = arith.constant 0 : index
    %c0_68 = arith.constant 0 : index
    %118 = vector.load %arg16[%c0_67, %c0_68] : memref<192x64xbf16, #tpu.memory_space<vmem>>, vector<192x64xbf16>
    %c0_69 = arith.constant 0 : index
    %c0_70 = arith.constant 0 : index
    %119 = vector.load %arg17[%c0_69, %c0_70] : memref<1x64xf32, #tpu.memory_space<vmem>>, vector<1x64xf32>
    %120 = arith.truncf %116 : vector<8x64xf32> to vector<8x64xbf16>
    %cst_71 = arith.constant dense<0.000000e+00> : vector<48x64xf32>
    %121 = tpu.matmul %117, %120, %cst_71 {dimension_numbers = #tpu.dot_dimension_numbers<[1], [0], [0], [1], [0, 0, 1, 1], [], []>} : vector<48x8xbf16>, vector<8x64xbf16>, vector<48x64xf32> -> vector<48x64xf32>
    %122 = arith.truncf %121 : vector<48x64xf32> to vector<48x64xbf16>
    %cst_72 = arith.constant 0.000000e+00 : f32
    %123 = vector.broadcast %cst_72 : f32 to vector<16x64xf32>
    %124 = vector.extract_strided_slice %122 {offsets = [0, 0], sizes = [16, 64], strides = [1, 1]} : vector<48x64xbf16> to vector<16x64xbf16>
    %125 = vector.extract_strided_slice %118 {offsets = [0, 0], sizes = [64, 64], strides = [1, 1]} : vector<192x64xbf16> to vector<64x64xbf16>
    %cst_73 = arith.constant dense<0.000000e+00> : vector<16x64xf32>
    %126 = tpu.matmul %124, %125, %cst_73 {dimension_numbers = #tpu.dot_dimension_numbers<[1], [0], [0], [1], [0, 0, 1, 1], [], []>} : vector<16x64xbf16>, vector<64x64xbf16>, vector<16x64xf32> -> vector<16x64xf32>
    %127 = arith.addf %123, %126 : vector<16x64xf32>
    %128 = vector.extract_strided_slice %122 {offsets = [16, 0], sizes = [16, 64], strides = [1, 1]} : vector<48x64xbf16> to vector<16x64xbf16>
    %129 = vector.extract_strided_slice %118 {offsets = [64, 0], sizes = [64, 64], strides = [1, 1]} : vector<192x64xbf16> to vector<64x64xbf16>
    %cst_74 = arith.constant dense<0.000000e+00> : vector<16x64xf32>
    %130 = tpu.matmul %128, %129, %cst_74 {dimension_numbers = #tpu.dot_dimension_numbers<[1], [0], [0], [1], [0, 0, 1, 1], [], []>} : vector<16x64xbf16>, vector<64x64xbf16>, vector<16x64xf32> -> vector<16x64xf32>
    %131 = arith.addf %127, %130 : vector<16x64xf32>
    %132 = vector.extract_strided_slice %122 {offsets = [32, 0], sizes = [16, 64], strides = [1, 1]} : vector<48x64xbf16> to vector<16x64xbf16>
    %133 = vector.extract_strided_slice %118 {offsets = [128, 0], sizes = [64, 64], strides = [1, 1]} : vector<192x64xbf16> to vector<64x64xbf16>
    %cst_75 = arith.constant dense<0.000000e+00> : vector<16x64xf32>
    %134 = tpu.matmul %132, %133, %cst_75 {dimension_numbers = #tpu.dot_dimension_numbers<[1], [0], [0], [1], [0, 0, 1, 1], [], []>} : vector<16x64xbf16>, vector<64x64xbf16>, vector<16x64xf32> -> vector<16x64xf32>
    %135 = arith.addf %131, %134 : vector<16x64xf32>
    %136 = vector.broadcast %119 : vector<1x64xf32> to vector<16x64xf32>
    %137 = arith.addf %135, %136 : vector<16x64xf32>
    %c0_76 = arith.constant 0 : index
    %c0_77 = arith.constant 0 : index
    %c0_78 = arith.constant 0 : index
    %138 = vector.load %arg18[%c0_76, %c0_77, %c0_78] : memref<1x16x64xf32, #tpu.memory_space<vmem>>, vector<1x16x64xf32>
    %139 = vector.shape_cast %138 : vector<1x16x64xf32> to vector<16x64xf32>
    %140 = vector.shape_cast %137 : vector<16x64xf32> to vector<1x16x64xf32>
    tpu.vector_store %arg18[%c0_76, %c0_77, %c0_78], %140 {strides = array<i32>} : memref<1x16x64xf32, #tpu.memory_space<vmem>>, vector<1x16x64xf32>,
    return
  }
  func.func @transform_0(%arg0: i32) -> (i32, i32, i32) {
    %c0_i32 = arith.constant 0 : i32
    %c0_i32_0 = arith.constant 0 : i32
    %c0_i32_1 = arith.constant 0 : i32
    return %arg0, %c0_i32, %c0_i32_0 : i32, i32, i32
  }
  func.func @transform_1(%arg0: i32) -> (i32, i32, i32) {
    %c0_i32 = arith.constant 0 : i32
    %c0_i32_0 = arith.constant 0 : i32
    %c0_i32_1 = arith.constant 0 : i32
    return %arg0, %c0_i32, %c0_i32_0 : i32, i32, i32
  }
  func.func @transform_2(%arg0: i32) -> (i32, i32, i32) {
    %c0_i32 = arith.constant 0 : i32
    %c0_i32_0 = arith.constant 0 : i32
    %c0_i32_1 = arith.constant 0 : i32
    return %arg0, %c0_i32, %c0_i32_0 : i32, i32, i32
  }
  func.func @transform_3(%arg0: i32) -> (i32, i32) {
    %c0_i32 = arith.constant 0 : i32
    %c0_i32_0 = arith.constant 0 : i32
    %c0_i32_1 = arith.constant 0 : i32
    return %c0_i32, %c0_i32_0 : i32, i32
  }
  func.func @transform_4(%arg0: i32) -> (i32, i32) {
    %c0_i32 = arith.constant 0 : i32
    %c0_i32_0 = arith.constant 0 : i32
    %c0_i32_1 = arith.constant 0 : i32
    return %c0_i32, %c0_i32_0 : i32, i32
  }
  func.func @transform_5(%arg0: i32) -> (i32, i32) {
    %c0_i32 = arith.constant 0 : i32
    %c0_i32_0 = arith.constant 0 : i32
    %c0_i32_1 = arith.constant 0 : i32
    return %c0_i32, %c0_i32_0 : i32, i32
  }
  func.func @transform_6(%arg0: i32) -> (i32, i32) {
    %c0_i32 = arith.constant 0 : i32
    %c0_i32_0 = arith.constant 0 : i32
    %c0_i32_1 = arith.constant 0 : i32
    return %c0_i32, %c0_i32_0 : i32, i32
  }
  func.func @transform_7(%arg0: i32) -> (i32, i32) {
    %c0_i32 = arith.constant 0 : i32
    %c0_i32_0 = arith.constant 0 : i32
    %c0_i32_1 = arith.constant 0 : i32
    return %c0_i32, %c0_i32_0 : i32, i32
  }
  func.func @transform_8(%arg0: i32) -> (i32, i32) {
    %c0_i32 = arith.constant 0 : i32
    %c0_i32_0 = arith.constant 0 : i32
    %c0_i32_1 = arith.constant 0 : i32
    return %c0_i32, %c0_i32_0 : i32, i32
  }
  func.func @transform_9(%arg0: i32) -> (i32, i32) {
    %c0_i32 = arith.constant 0 : i32
    %c0_i32_0 = arith.constant 0 : i32
    %c0_i32_1 = arith.constant 0 : i32
    return %c0_i32, %c0_i32_0 : i32, i32
  }
  func.func @transform_10(%arg0: i32) -> (i32, i32) {
    %c0_i32 = arith.constant 0 : i32
    %c0_i32_0 = arith.constant 0 : i32
    %c0_i32_1 = arith.constant 0 : i32
    return %c0_i32, %c0_i32_0 : i32, i32
  }
  func.func @transform_11(%arg0: i32) -> (i32, i32) {
    %c0_i32 = arith.constant 0 : i32
    %c0_i32_0 = arith.constant 0 : i32
    %c0_i32_1 = arith.constant 0 : i32
    return %c0_i32, %c0_i32_0 : i32, i32
  }
  func.func @transform_12(%arg0: i32) -> (i32, i32) {
    %c0_i32 = arith.constant 0 : i32
    %c0_i32_0 = arith.constant 0 : i32
    %c0_i32_1 = arith.constant 0 : i32
    return %c0_i32, %c0_i32_0 : i32, i32
  }
  func.func @transform_13(%arg0: i32) -> (i32, i32) {
    %c0_i32 = arith.constant 0 : i32
    %c0_i32_0 = arith.constant 0 : i32
    %c0_i32_1 = arith.constant 0 : i32
    return %c0_i32, %c0_i32_0 : i32, i32
  }
  func.func @transform_14(%arg0: i32) -> (i32, i32) {
    %c0_i32 = arith.constant 0 : i32
    %c0_i32_0 = arith.constant 0 : i32
    %c0_i32_1 = arith.constant 0 : i32
    return %c0_i32, %c0_i32_0 : i32, i32
  }
  func.func @transform_15(%arg0: i32) -> (i32, i32) {
    %c0_i32 = arith.constant 0 : i32
    %c0_i32_0 = arith.constant 0 : i32
    %c0_i32_1 = arith.constant 0 : i32
    return %c0_i32, %c0_i32_0 : i32, i32
  }
  func.func @transform_16(%arg0: i32) -> (i32, i32) {
    %c0_i32 = arith.constant 0 : i32
    %c0_i32_0 = arith.constant 0 : i32
    %c0_i32_1 = arith.constant 0 : i32
    return %c0_i32, %c0_i32_0 : i32, i32
  }
  func.func @transform_17(%arg0: i32) -> (i32, i32, i32) {
    %c0_i32 = arith.constant 0 : i32
    %c0_i32_0 = arith.constant 0 : i32
    %c0_i32_1 = arith.constant 0 : i32
    return %arg0, %c0_i32, %c0_i32_0 : i32, i32, i32
  }
  func.func @transform_18(%arg0: i32) -> (i32, i32, i32) {
    %c0_i32 = arith.constant 0 : i32
    %c0_i32_0 = arith.constant 0 : i32
    %c0_i32_1 = arith.constant 0 : i32
    return %arg0, %c0_i32, %c0_i32_0 : i32, i32, i32
  }
  func.func @transform_19(%arg0: i32) -> (i32, i32, i32) {
    %c0_i32 = arith.constant 0 : i32
    %c0_i32_0 = arith.constant 0 : i32
    %c0_i32_1 = arith.constant 0 : i32
    return %arg0, %c0_i32, %c0_i32_0 : i32, i32, i32
  }
}

</mosaic_0001>

<llo_original>
// kernel: hourglass1_forward.1
$region0: #{hourglass1_forward.1}
  #allocation0 [shape = 'u32[]', space=smem, size = 0x4, offset = 0x4, fixed_abs, tag = 'smem constant byte address 0x4 - core index']
  #allocation1 [shape = 'u32[72,128]{1,0:T(1,128)}', space=vmem, size = 0x9000, scoped, tag = 'internal scratch']
  %s0 = inlined_call_operand.vmem [shape: f32[2,16,64], index: 0, kind: input, shape index: {}]
  %s1 = inlined_call_operand.vmem [shape: f32[2,8,32], index: 1, kind: input, shape index: {}]
  %s2 = inlined_call_operand.vmem [shape: f32[2,4,32], index: 2, kind: input, shape index: {}]
  %s3 = inlined_call_operand.vmem [shape: bf16[24,16], index: 3, kind: input, shape index: {}]
  %s4 = inlined_call_operand.vmem [shape: bf16[192,32], index: 4, kind: input, shape index: {}]
  %s5 = inlined_call_operand.vmem [shape: bf16[24,8], index: 5, kind: input, shape index: {}]
  %s6 = inlined_call_operand.vmem [shape: bf16[96,32], index: 6, kind: input, shape index: {}]
  %s7 = inlined_call_operand.vmem [shape: bf16[12,8], index: 7, kind: input, shape index: {}]
  %s8 = inlined_call_operand.vmem [shape: bf16[192,32], index: 8, kind: input, shape index: {}]
  %s9 = inlined_call_operand.vmem [shape: bf16[12,4], index: 9, kind: input, shape index: {}]
  %s10 = inlined_call_operand.vmem [shape: bf16[96,32], index: 10, kind: input, shape index: {}]
  %s11 = inlined_call_operand.vmem [shape: bf16[24,4], index: 11, kind: input, shape index: {}]
  %s12 = inlined_call_operand.vmem [shape: bf16[192,64], index: 12, kind: input, shape index: {}]
  %s13 = inlined_call_operand.vmem [shape: f32[1,64], index: 13, kind: input, shape index: {}]
  %s14 = inlined_call_operand.vmem [shape: bf16[48,8], index: 14, kind: input, shape index: {}]
  %s15 = inlined_call_operand.vmem [shape: bf16[192,64], index: 15, kind: input, shape index: {}]
  %s16 = inlined_call_operand.vmem [shape: f32[1,64], index: 16, kind: input, shape index: {}]
  %s17 = inlined_call_operand.vmem [shape: f32[2,16,64], index: 17, kind: output, shape index: {0}]
  %s18 = inlined_call_operand.vmem [shape: f32[2,8,64], index: 18, kind: output, shape index: {1}]
  %s19 = inlined_call_operand.vmem [shape: f32[2,4,64], index: 19, kind: output, shape index: {2}]
  %20 = xla_tuple %s17, %s18, %s19
  %s21 = sld [smem:[#allocation0]]
  $region117: #{hourglass1_forward.1} parent=0
    _
  %s23 = ssub.s32 1, %s21
  %s24 = scalar_select 0, %s23, %s21
  loop: start=0, step=1, limit=4
  $region2: #{hourglass1_forward.1} parent=0 // loop_pre_header
    _
  $region3: #{hourglass1_forward.1} parent=0 // loop_header
    %s26 = sphi 0, %s30
    %p27 = scmp.ge.s32.totalorder %s26, 4
    %s36 = sphi 0, %s38
    %s39 = sphi 0, %s36
    %s40 = sphi 0, %s39
    %s56 = sphi 0, %s40
    %s62 = sphi 0, %s64
    %s65 = sphi 0, %s62
    %s66 = sphi 0, %s65
    %s82 = sphi 0, %s66
    %s88 = sphi 0, %s90
    %s91 = sphi 0, %s88
    %s92 = sphi 0, %s91
    %s108 = sphi 0, %s92
    %s112 = sphi 0, %s112
    %s114 = sphi 0, %s112
    %s115 = sphi 0, %s114
    %s129 = sphi 0, %s115
    %s133 = sphi 0, %s133
    %s135 = sphi 0, %s133
    %s136 = sphi 0, %s135
    %s150 = sphi 0, %s136
    %s154 = sphi 0, %s154
    %s156 = sphi 0, %s154
    %s157 = sphi 0, %s156
    %s171 = sphi 0, %s157
    %s175 = sphi 0, %s175
    %s177 = sphi 0, %s175
    %s178 = sphi 0, %s177
    %s192 = sphi 0, %s178
    %s196 = sphi 0, %s196
    %s198 = sphi 0, %s196
    %s199 = sphi 0, %s198
    %s213 = sphi 0, %s199
    %s217 = sphi 0, %s217
    %s219 = sphi 0, %s217
    %s220 = sphi 0, %s219
    %s234 = sphi 0, %s220
    %s238 = sphi 0, %s238
    %s240 = sphi 0, %s238
    %s241 = sphi 0, %s240
    %s255 = sphi 0, %s241
    %s259 = sphi 0, %s259
    %s261 = sphi 0, %s259
    %s262 = sphi 0, %s261
    %s276 = sphi 0, %s262
    %s280 = sphi 0, %s280
    %s282 = sphi 0, %s280
    %s283 = sphi 0, %s282
    %s297 = sphi 0, %s283
    %s301 = sphi 0, %s301
    %s303 = sphi 0, %s301
    %s304 = sphi 0, %s303
    %s318 = sphi 0, %s304
    %s322 = sphi 0, %s322
    %s324 = sphi 0, %s322
    %s325 = sphi 0, %s324
    %s339 = sphi 0, %s325
    %s343 = sphi 0, %s343
    %s345 = sphi 0, %s343
    %s346 = sphi 0, %s345
    %s360 = sphi 0, %s346
    %s364 = sphi 0, %s364
    %s366 = sphi 0, %s364
    %s367 = sphi 0, %s366
    %s381 = sphi 0, %s367
    %s385 = sphi 0, %s385
    %s387 = sphi 0, %s385
    %s388 = sphi 0, %s387
    %s402 = sphi 0, %s388
    %s408 = sphi 0, %s410
    %s411 = sphi 0, %s408
    %s412 = sphi 0, %s411
    %s428 = sphi 0, %s412
    %s434 = sphi 0, %s436
    %s437 = sphi 0, %s434
    %s438 = sphi 0, %s437
    %s454 = sphi 0, %s438
    %s460 = sphi 0, %s462
    %s463 = sphi 0, %s460
    %s464 = sphi 0, %s463
    %s480 = sphi 0, %s464
  $region4: #{hourglass1_forward.1} parent=0 // loop_header_branch
    %29 = sbr.rel (%p27) target = $region8
  $region5: #{hourglass1_forward.1} parent=0 // loop_body
    %s31 = ssub.s32 %s26, 1
    %s32 = ssub.s32 %s26, 2
    %s33 = sadd.s32 %s26, 1
    %s34 = ssub.s32 %s26, %s33
    %p35 = scmp.eq.s32.totalorder %s34, 0
    %s37 = sadd.s32 %s36, 1
    %s38 = scalar_select %p35, %s36, %s37
    %p41 = pneg %p35
    %p42 = scmp.eq.s32.totalorder %s26, 1
    %p43 = por %p41, %p42
    %p44 = scmp.ne.s32.totalorder %s36, %s39
    %p45 = scmp.eq.s32.totalorder %s26, 0
    %p46 = por %p44, %p45
    %p47 = scmp.ne.s32.totalorder %s36, %s39
    %p48 = scmp.eq.s32.totalorder %s31, 1
    %p49 = por %p47, %p48
    %p50 = scmp.ne.s32.totalorder %s39, %s40
    %p51 = scmp.eq.s32.totalorder %s31, 0
    %p52 = por %p50, %p51
    %p53 = scmp.ne.s32.totalorder %s39, %s40
    %p54 = scmp.eq.s32.totalorder %s32, 1
    %p55 = por %p53, %p54
    %p57 = scmp.ne.s32.totalorder %s40, %s56
    %p58 = scmp.eq.s32.totalorder %s32, 0
    %p59 = por %p57, %p58
    %s60 = ssub.s32 %s26, %s33
    %p61 = scmp.eq.s32.totalorder %s60, 0
    %s63 = sadd.s32 %s62, 1
    %s64 = scalar_select %p61, %s62, %s63
    %p67 = pneg %p61
    %p68 = scmp.eq.s32.totalorder %s26, 1
    %p69 = por %p67, %p68
    %p70 = scmp.ne.s32.totalorder %s62, %s65
    %p71 = scmp.eq.s32.totalorder %s26, 0
    %p72 = por %p70, %p71
    %p73 = scmp.ne.s32.totalorder %s62, %s65
    %p74 = scmp.eq.s32.totalorder %s31, 1
    %p75 = por %p73, %p74
    %p76 = scmp.ne.s32.totalorder %s65, %s66
    %p77 = scmp.eq.s32.totalorder %s31, 0
    %p78 = por %p76, %p77
    %p79 = scmp.ne.s32.totalorder %s65, %s66
    %p80 = scmp.eq.s32.totalorder %s32, 1
    %p81 = por %p79, %p80
    %p83 = scmp.ne.s32.totalorder %s66, %s82
    %p84 = scmp.eq.s32.totalorder %s32, 0
    %p85 = por %p83, %p84
    %s86 = ssub.s32 %s26, %s33
    %p87 = scmp.eq.s32.totalorder %s86, 0
    %s89 = sadd.s32 %s88, 1
    %s90 = scalar_select %p87, %s88, %s89
    %p93 = pneg %p87
    %p94 = scmp.eq.s32.totalorder %s26, 1
    %p95 = por %p93, %p94
    %p96 = scmp.ne.s32.totalorder %s88, %s91
    %p97 = scmp.eq.s32.totalorder %s26, 0
    %p98 = por %p96, %p97
    %p99 = scmp.ne.s32.totalorder %s88, %s91
    %p100 = scmp.eq.s32.totalorder %s31, 1
    %p101 = por %p99, %p100
    %p102 = scmp.ne.s32.totalorder %s91, %s92
    %p103 = scmp.eq.s32.totalorder %s31, 0
    %p104 = por %p102, %p103
    %p105 = scmp.ne.s32.totalorder %s91, %s92
    %p106 = scmp.eq.s32.totalorder %s32, 1
    %p107 = por %p105, %p106
    %p109 = scmp.ne.s32.totalorder %s92, %s108
    %p110 = scmp.eq.s32.totalorder %s32, 0
    %p111 = por %p109, %p110
    %s113 = sadd.s32 %s112, 1
    %p116 = scmp.eq.s32.totalorder %s26, 1
    %p117 = scmp.ne.s32.totalorder %s112, %s114
    %p118 = scmp.eq.s32.totalorder %s26, 0
    %p119 = por %p117, %p118
    %p120 = scmp.ne.s32.totalorder %s112, %s114
    %p121 = scmp.eq.s32.totalorder %s31, 1
    %p122 = por %p120, %p121
    %p123 = scmp.ne.s32.totalorder %s114, %s115
    %p124 = scmp.eq.s32.totalorder %s31, 0
    %p125 = por %p123, %p124
    %p126 = scmp.ne.s32.totalorder %s114, %s115
    %p127 = scmp.eq.s32.totalorder %s32, 1
    %p128 = por %p126, %p127
    %p130 = scmp.ne.s32.totalorder %s115, %s129
    %p131 = scmp.eq.s32.totalorder %s32, 0
    %p132 = por %p130, %p131
    %s134 = sadd.s32 %s133, 1
    %p137 = scmp.eq.s32.totalorder %s26, 1
    %p138 = scmp.ne.s32.totalorder %s133, %s135
    %p139 = scmp.eq.s32.totalorder %s26, 0
    %p140 = por %p138, %p139
    %p141 = scmp.ne.s32.totalorder %s133, %s135
    %p142 = scmp.eq.s32.totalorder %s31, 1
    %p143 = por %p141, %p142
    %p144 = scmp.ne.s32.totalorder %s135, %s136
    %p145 = scmp.eq.s32.totalorder %s31, 0
    %p146 = por %p144, %p145
    %p147 = scmp.ne.s32.totalorder %s135, %s136
    %p148 = scmp.eq.s32.totalorder %s32, 1
    %p149 = por %p147, %p148
    %p151 = scmp.ne.s32.totalorder %s136, %s150
    %p152 = scmp.eq.s32.totalorder %s32, 0
    %p153 = por %p151, %p152
    %s155 = sadd.s32 %s154, 1
    %p158 = scmp.eq.s32.totalorder %s26, 1
    %p159 = scmp.ne.s32.totalorder %s154, %s156
    %p160 = scmp.eq.s32.totalorder %s26, 0
    %p161 = por %p159, %p160
    %p162 = scmp.ne.s32.totalorder %s154, %s156
    %p163 = scmp.eq.s32.totalorder %s31, 1
    %p164 = por %p162, %p163
    %p165 = scmp.ne.s32.totalorder %s156, %s157
    %p166 = scmp.eq.s32.totalorder %s31, 0
    %p167 = por %p165, %p166
    %p168 = scmp.ne.s32.totalorder %s156, %s157
    %p169 = scmp.eq.s32.totalorder %s32, 1
    %p170 = por %p168, %p169
    %p172 = scmp.ne.s32.totalorder %s157, %s171
    %p173 = scmp.eq.s32.totalorder %s32, 0
    %p174 = por %p172, %p173
    %s176 = sadd.s32 %s175, 1
    %p179 = scmp.eq.s32.totalorder %s26, 1
    %p180 = scmp.ne.s32.totalorder %s175, %s177
    %p181 = scmp.eq.s32.totalorder %s26, 0
    %p182 = por %p180, %p181
    %p183 = scmp.ne.s32.totalorder %s175, %s177
    %p184 = scmp.eq.s32.totalorder %s31, 1
    %p185 = por %p183, %p184
    %p186 = scmp.ne.s32.totalorder %s177, %s178
    %p187 = scmp.eq.s32.totalorder %s31, 0
    %p188 = por %p186, %p187
    %p189 = scmp.ne.s32.totalorder %s177, %s178
    %p190 = scmp.eq.s32.totalorder %s32, 1
    %p191 = por %p189, %p190
    %p193 = scmp.ne.s32.totalorder %s178, %s192
    %p194 = scmp.eq.s32.totalorder %s32, 0
    %p195 = por %p193, %p194
    %s197 = sadd.s32 %s196, 1
    %p200 = scmp.eq.s32.totalorder %s26, 1
    %p201 = scmp.ne.s32.totalorder %s196, %s198
    %p202 = scmp.eq.s32.totalorder %s26, 0
    %p203 = por %p201, %p202
    %p204 = scmp.ne.s32.totalorder %s196, %s198
    %p205 = scmp.eq.s32.totalorder %s31, 1
    %p206 = por %p204, %p205
    %p207 = scmp.ne.s32.totalorder %s198, %s199
    %p208 = scmp.eq.s32.totalorder %s31, 0
    %p209 = por %p207, %p208
    %p210 = scmp.ne.s32.totalorder %s198, %s199
    %p211 = scmp.eq.s32.totalorder %s32, 1
    %p212 = por %p210, %p211
    %p214 = scmp.ne.s32.totalorder %s199, %s213
    %p215 = scmp.eq.s32.totalorder %s32, 0
    %p216 = por %p214, %p215
    %s218 = sadd.s32 %s217, 1
    %p221 = scmp.eq.s32.totalorder %s26, 1
    %p222 = scmp.ne.s32.totalorder %s217, %s219
    %p223 = scmp.eq.s32.totalorder %s26, 0
    %p224 = por %p222, %p223
    %p225 = scmp.ne.s32.totalorder %s217, %s219
    %p226 = scmp.eq.s32.totalorder %s31, 1
    %p227 = por %p225, %p226
    %p228 = scmp.ne.s32.totalorder %s219, %s220
    %p229 = scmp.eq.s32.totalorder %s31, 0
    %p230 = por %p228, %p229
    %p231 = scmp.ne.s32.totalorder %s219, %s220
    %p232 = scmp.eq.s32.totalorder %s32, 1
    %p233 = por %p231, %p232
    %p235 = scmp.ne.s32.totalorder %s220, %s234
    %p236 = scmp.eq.s32.totalorder %s32, 0
    %p237 = por %p235, %p236
    %s239 = sadd.s32 %s238, 1
    %p242 = scmp.eq.s32.totalorder %s26, 1
    %p243 = scmp.ne.s32.totalorder %s238, %s240
    %p244 = scmp.eq.s32.totalorder %s26, 0
    %p245 = por %p243, %p244
    %p246 = scmp.ne.s32.totalorder %s238, %s240
    %p247 = scmp.eq.s32.totalorder %s31, 1
    %p248 = por %p246, %p247
    %p249 = scmp.ne.s32.totalorder %s240, %s241
    %p250 = scmp.eq.s32.totalorder %s31, 0
    %p251 = por %p249, %p250
    %p252 = scmp.ne.s32.totalorder %s240, %s241
    %p253 = scmp.eq.s32.totalorder %s32, 1
    %p254 = por %p252, %p253
    %p256 = scmp.ne.s32.totalorder %s241, %s255
    %p257 = scmp.eq.s32.totalorder %s32, 0
    %p258 = por %p256, %p257
    %s260 = sadd.s32 %s259, 1
    %p263 = scmp.eq.s32.totalorder %s26, 1
    %p264 = scmp.ne.s32.totalorder %s259, %s261
    %p265 = scmp.eq.s32.totalorder %s26, 0
    %p266 = por %p264, %p265
    %p267 = scmp.ne.s32.totalorder %s259, %s261
    %p268 = scmp.eq.s32.totalorder %s31, 1
    %p269 = por %p267, %p268
    %p270 = scmp.ne.s32.totalorder %s261, %s262
    %p271 = scmp.eq.s32.totalorder %s31, 0
    %p272 = por %p270, %p271
    %p273 = scmp.ne.s32.totalorder %s261, %s262
    %p274 = scmp.eq.s32.totalorder %s32, 1
    %p275 = por %p273, %p274
    %p277 = scmp.ne.s32.totalorder %s262, %s276
    %p278 = scmp.eq.s32.totalorder %s32, 0
    %p279 = por %p277, %p278
    %s281 = sadd.s32 %s280, 1
    %p284 = scmp.eq.s32.totalorder %s26, 1
    %p285 = scmp.ne.s32.totalorder %s280, %s282
    %p286 = scmp.eq.s32.totalorder %s26, 0
    %p287 = por %p285, %p286
    %p288 = scmp.ne.s32.totalorder %s280, %s282
    %p289 = scmp.eq.s32.totalorder %s31, 1
    %p290 = por %p288, %p289
    %p291 = scmp.ne.s32.totalorder %s282, %s283
    %p292 = scmp.eq.s32.totalorder %s31, 0
    %p293 = por %p291, %p292
    %p294 = scmp.ne.s32.totalorder %s282, %s283
    %p295 = scmp.eq.s32.totalorder %s32, 1
    %p296 = por %p294, %p295
    %p298 = scmp.ne.s32.totalorder %s283, %s297
    %p299 = scmp.eq.s32.totalorder %s32, 0
    %p300 = por %p298, %p299
    %s302 = sadd.s32 %s301, 1
    %p305 = scmp.eq.s32.totalorder %s26, 1
    %p306 = scmp.ne.s32.totalorder %s301, %s303
    %p307 = scmp.eq.s32.totalorder %s26, 0
    %p308 = por %p306, %p307
    %p309 = scmp.ne.s32.totalorder %s301, %s303
    %p310 = scmp.eq.s32.totalorder %s31, 1
    %p311 = por %p309, %p310
    %p312 = scmp.ne.s32.totalorder %s303, %s304
    %p313 = scmp.eq.s32.totalorder %s31, 0
    %p314 = por %p312, %p313
    %p315 = scmp.ne.s32.totalorder %s303, %s304
    %p316 = scmp.eq.s32.totalorder %s32, 1
    %p317 = por %p315, %p316
    %p319 = scmp.ne.s32.totalorder %s304, %s318
    %p320 = scmp.eq.s32.totalorder %s32, 0
    %p321 = por %p319, %p320
    %s323 = sadd.s32 %s322, 1
    %p326 = scmp.eq.s32.totalorder %s26, 1
    %p327 = scmp.ne.s32.totalorder %s322, %s324
    %p328 = scmp.eq.s32.totalorder %s26, 0
    %p329 = por %p327, %p328
    %p330 = scmp.ne.s32.totalorder %s322, %s324
    %p331 = scmp.eq.s32.totalorder %s31, 1
    %p332 = por %p330, %p331
    %p333 = scmp.ne.s32.totalorder %s324, %s325
    %p334 = scmp.eq.s32.totalorder %s31, 0
    %p335 = por %p333, %p334
    %p336 = scmp.ne.s32.totalorder %s324, %s325
    %p337 = scmp.eq.s32.totalorder %s32, 1
    %p338 = por %p336, %p337
    %p340 = scmp.ne.s32.totalorder %s325, %s339
    %p341 = scmp.eq.s32.totalorder %s32, 0
    %p342 = por %p340, %p341
    %s344 = sadd.s32 %s343, 1
    %p347 = scmp.eq.s32.totalorder %s26, 1
    %p348 = scmp.ne.s32.totalorder %s343, %s345
    %p349 = scmp.eq.s32.totalorder %s26, 0
    %p350 = por %p348, %p349
    %p351 = scmp.ne.s32.totalorder %s343, %s345
    %p352 = scmp.eq.s32.totalorder %s31, 1
    %p353 = por %p351, %p352
    %p354 = scmp.ne.s32.totalorder %s345, %s346
    %p355 = scmp.eq.s32.totalorder %s31, 0
    %p356 = por %p354, %p355
    %p357 = scmp.ne.s32.totalorder %s345, %s346
    %p358 = scmp.eq.s32.totalorder %s32, 1
    %p359 = por %p357, %p358
    %p361 = scmp.ne.s32.totalorder %s346, %s360
    %p362 = scmp.eq.s32.totalorder %s32, 0
    %p363 = por %p361, %p362
    %s365 = sadd.s32 %s364, 1
    %p368 = scmp.eq.s32.totalorder %s26, 1
    %p369 = scmp.ne.s32.totalorder %s364, %s366
    %p370 = scmp.eq.s32.totalorder %s26, 0
    %p371 = por %p369, %p370
    %p372 = scmp.ne.s32.totalorder %s364, %s366
    %p373 = scmp.eq.s32.totalorder %s31, 1
    %p374 = por %p372, %p373
    %p375 = scmp.ne.s32.totalorder %s366, %s367
    %p376 = scmp.eq.s32.totalorder %s31, 0
    %p377 = por %p375, %p376
    %p378 = scmp.ne.s32.totalorder %s366, %s367
    %p379 = scmp.eq.s32.totalorder %s32, 1
    %p380 = por %p378, %p379
    %p382 = scmp.ne.s32.totalorder %s367, %s381
    %p383 = scmp.eq.s32.totalorder %s32, 0
    %p384 = por %p382, %p383
    %s386 = sadd.s32 %s385, 1
    %p389 = scmp.eq.s32.totalorder %s26, 1
    %p390 = scmp.ne.s32.totalorder %s385, %s387
    %p391 = scmp.eq.s32.totalorder %s26, 0
    %p392 = por %p390, %p391
    %p393 = scmp.ne.s32.totalorder %s385, %s387
    %p394 = scmp.eq.s32.totalorder %s31, 1
    %p395 = por %p393, %p394
    %p396 = scmp.ne.s32.totalorder %s387, %s388
    %p397 = scmp.eq.s32.totalorder %s31, 0
    %p398 = por %p396, %p397
    %p399 = scmp.ne.s32.totalorder %s387, %s388
    %p400 = scmp.eq.s32.totalorder %s32, 1
    %p401 = por %p399, %p400
    %p403 = scmp.ne.s32.totalorder %s388, %s402
    %p404 = scmp.eq.s32.totalorder %s32, 0
    %p405 = por %p403, %p404
    %s406 = ssub.s32 %s26, %s33
    %p407 = scmp.eq.s32.totalorder %s406, 0
    %s409 = sadd.s32 %s408, 1
    %s410 = scalar_select %p407, %s408, %s409
    %p413 = pneg %p407
    %p414 = scmp.eq.s32.totalorder %s26, 1
    %p415 = por %p413, %p414
    %p416 = scmp.ne.s32.totalorder %s408, %s411
    %p417 = scmp.eq.s32.totalorder %s26, 0
    %p418 = por %p416, %p417
    %p419 = scmp.ne.s32.totalorder %s408, %s411
    %p420 = scmp.eq.s32.totalorder %s31, 1
    %p421 = por %p419, %p420
    %p422 = scmp.ne.s32.totalorder %s411, %s412
    %p423 = scmp.eq.s32.totalorder %s31, 0
    %p424 = por %p422, %p423
    %p425 = scmp.ne.s32.totalorder %s411, %s412
    %p426 = scmp.eq.s32.totalorder %s32, 1
    %p427 = por %p425, %p426
    %p429 = scmp.ne.s32.totalorder %s412, %s428
    %p430 = scmp.eq.s32.totalorder %s32, 0
    %p431 = por %p429, %p430
    %s432 = ssub.s32 %s26, %s33
    %p433 = scmp.eq.s32.totalorder %s432, 0
    %s435 = sadd.s32 %s434, 1
    %s436 = scalar_select %p433, %s434, %s435
    %p439 = pneg %p433
    %p440 = scmp.eq.s32.totalorder %s26, 1
    %p441 = por %p439, %p440
    %p442 = scmp.ne.s32.totalorder %s434, %s437
    %p443 = scmp.eq.s32.totalorder %s26, 0
    %p444 = por %p442, %p443
    %p445 = scmp.ne.s32.totalorder %s434, %s437
    %p446 = scmp.eq.s32.totalorder %s31, 1
    %p447 = por %p445, %p446
    %p448 = scmp.ne.s32.totalorder %s437, %s438
    %p449 = scmp.eq.s32.totalorder %s31, 0
    %p450 = por %p448, %p449
    %p451 = scmp.ne.s32.totalorder %s437, %s438
    %p452 = scmp.eq.s32.totalorder %s32, 1
    %p453 = por %p451, %p452
    %p455 = scmp.ne.s32.totalorder %s438, %s454
    %p456 = scmp.eq.s32.totalorder %s32, 0
    %p457 = por %p455, %p456
    %s458 = ssub.s32 %s26, %s33
    %p459 = scmp.eq.s32.totalorder %s458, 0
    %s461 = sadd.s32 %s460, 1
    %s462 = scalar_select %p459, %s460, %s461
    %p465 = pneg %p459
    %p466 = scmp.eq.s32.totalorder %s26, 1
    %p467 = por %p465, %p466
    %p468 = scmp.ne.s32.totalorder %s460, %s463
    %p469 = scmp.eq.s32.totalorder %s26, 0
    %p470 = por %p468, %p469
    %p471 = scmp.ne.s32.totalorder %s460, %s463
    %p472 = scmp.eq.s32.totalorder %s31, 1
    %p473 = por %p471, %p472
    %p474 = scmp.ne.s32.totalorder %s463, %s464
    %p475 = scmp.eq.s32.totalorder %s31, 0
    %p476 = por %p474, %p475
    %p477 = scmp.ne.s32.totalorder %s463, %s464
    %p478 = scmp.eq.s32.totalorder %s32, 1
    %p479 = por %p477, %p478
    %p481 = scmp.ne.s32.totalorder %s464, %s480
    %p482 = scmp.eq.s32.totalorder %s32, 0
    %p483 = por %p481, %p482
    %p484 = scmp.le.s32.totalorder 1, %s26
    %p485 = scmp.lt.s32.totalorder %s26, 3
    %p486 = pnand %p484, %p485
    %p487 = pneg %p486
    // Predicated region
    $region9: #{hourglass1_forward.1} parent=5 // pred_check
      _
    $region10: #{hourglass1_forward.1} parent=5 // pred_check_branch
      %489 = sbr.rel (%p486) target = $region12
    $region11: #{hourglass1_forward.1} parent=5 // pred_region
      %s490 = ssub.s32 %s26, 1
      // Predicated region
      $region13: #{hourglass1_forward.1} parent=11 // pred_check
        %p491 = pneg %p125
      $region14: #{hourglass1_forward.1} parent=11 // pred_check_branch
        %493 = sbr.rel (%p491) target = $region16
      $region15: #{hourglass1_forward.1} parent=11 // pred_region
        _
      $region16: #{hourglass1_forward.1} parent=11 // pred_fallthru
        _
      // Predicated region
      $region17: #{hourglass1_forward.1} parent=11 // pred_check
        %p494 = pneg %p146
      $region18: #{hourglass1_forward.1} parent=11 // pred_check_branch
        %496 = sbr.rel (%p494) target = $region20
      $region19: #{hourglass1_forward.1} parent=11 // pred_region
        _
      $region20: #{hourglass1_forward.1} parent=11 // pred_fallthru
        _
      // Predicated region
      $region21: #{hourglass1_forward.1} parent=11 // pred_check
        %p497 = pneg %p167
      $region22: #{hourglass1_forward.1} parent=11 // pred_check_branch
        %499 = sbr.rel (%p497) target = $region24
      $region23: #{hourglass1_forward.1} parent=11 // pred_region
        _
      $region24: #{hourglass1_forward.1} parent=11 // pred_fallthru
        _
      // Predicated region
      $region25: #{hourglass1_forward.1} parent=11 // pred_check
        %p500 = pneg %p188
      $region26: #{hourglass1_forward.1} parent=11 // pred_check_branch
        %502 = sbr.rel (%p500) target = $region28
      $region27: #{hourglass1_forward.1} parent=11 // pred_region
        _
      $region28: #{hourglass1_forward.1} parent=11 // pred_fallthru
        _
      // Predicated region
      $region29: #{hourglass1_forward.1} parent=11 // pred_check
        %p503 = pneg %p209
      $region30: #{hourglass1_forward.1} parent=11 // pred_check_branch
        %505 = sbr.rel (%p503) target = $region32
      $region31: #{hourglass1_forward.1} parent=11 // pred_region
        _
      $region32: #{hourglass1_forward.1} parent=11 // pred_fallthru
        _
      // Predicated region
      $region33: #{hourglass1_forward.1} parent=11 // pred_check
        %p506 = pneg %p230
      $region34: #{hourglass1_forward.1} parent=11 // pred_check_branch
        %508 = sbr.rel (%p506) target = $region36
      $region35: #{hourglass1_forward.1} parent=11 // pred_region
        _
      $region36: #{hourglass1_forward.1} parent=11 // pred_fallthru
        _
      // Predicated region
      $region37: #{hourglass1_forward.1} parent=11 // pred_check
        %p509 = pneg %p251
      $region38: #{hourglass1_forward.1} parent=11 // pred_check_branch
        %511 = sbr.rel (%p509) target = $region40
      $region39: #{hourglass1_forward.1} parent=11 // pred_region
        _
      $region40: #{hourglass1_forward.1} parent=11 // pred_fallthru
        _
      // Predicated region
      $region41: #{hourglass1_forward.1} parent=11 // pred_check
        %p512 = pneg %p272
      $region42: #{hourglass1_forward.1} parent=11 // pred_check_branch
        %514 = sbr.rel (%p512) target = $region44
      $region43: #{hourglass1_forward.1} parent=11 // pred_region
        _
      $region44: #{hourglass1_forward.1} parent=11 // pred_fallthru
        _
      // Predicated region
      $region45: #{hourglass1_forward.1} parent=11 // pred_check
        %p515 = pneg %p293
      $region46: #{hourglass1_forward.1} parent=11 // pred_check_branch
        %517 = sbr.rel (%p515) target = $region48
      $region47: #{hourglass1_forward.1} parent=11 // pred_region
        _
      $region48: #{hourglass1_forward.1} parent=11 // pred_fallthru
        _
      // Predicated region
      $region49: #{hourglass1_forward.1} parent=11 // pred_check
        %p518 = pneg %p314
      $region50: #{hourglass1_forward.1} parent=11 // pred_check_branch
        %520 = sbr.rel (%p518) target = $region52
      $region51: #{hourglass1_forward.1} parent=11 // pred_region
        _
      $region52: #{hourglass1_forward.1} parent=11 // pred_fallthru
        _
      // Predicated region
      $region53: #{hourglass1_forward.1} parent=11 // pred_check
        %p521 = pneg %p335
      $region54: #{hourglass1_forward.1} parent=11 // pred_check_branch
        %523 = sbr.rel (%p521) target = $region56
      $region55: #{hourglass1_forward.1} parent=11 // pred_region
        _
      $region56: #{hourglass1_forward.1} parent=11 // pred_fallthru
        _
      // Predicated region
      $region57: #{hourglass1_forward.1} parent=11 // pred_check
        %p524 = pneg %p356
      $region58: #{hourglass1_forward.1} parent=11 // pred_check_branch
        %526 = sbr.rel (%p524) target = $region60
      $region59: #{hourglass1_forward.1} parent=11 // pred_region
        _
      $region60: #{hourglass1_forward.1} parent=11 // pred_fallthru
        _
      // Predicated region
      $region61: #{hourglass1_forward.1} parent=11 // pred_check
        %p527 = pneg %p377
      $region62: #{hourglass1_forward.1} parent=11 // pred_check_branch
        %529 = sbr.rel (%p527) target = $region64
      $region63: #{hourglass1_forward.1} parent=11 // pred_region
        _
      $region64: #{hourglass1_forward.1} parent=11 // pred_fallthru
        _
      // Predicated region
      $region65: #{hourglass1_forward.1} parent=11 // pred_check
        %p530 = pneg %p398
      $region66: #{hourglass1_forward.1} parent=11 // pred_check_branch
        %532 = sbr.rel (%p530) target = $region68
      $region67: #{hourglass1_forward.1} parent=11 // pred_region
        _
      $region68: #{hourglass1_forward.1} parent=11 // pred_fallthru
        _
    $region12: #{hourglass1_forward.1} parent=5 // pred_fallthru
      _
    %p533 = scmp.lt.s32.totalorder %s26, 2
    // Predicated region
    $region69: #{hourglass1_forward.1} parent=5 // pred_check
      %p534 = pneg %p533
    $region70: #{hourglass1_forward.1} parent=5 // pred_check_branch
      %536 = sbr.rel (%p534) target = $region72
    $region71: #{hourglass1_forward.1} parent=5 // pred_region
      // Predicated region
      $region73: #{hourglass1_forward.1} parent=71 // pred_check
        %p537 = pneg %p46
      $region74: #{hourglass1_forward.1} parent=71 // pred_check_branch
        %539 = sbr.rel (%p537) target = $region76
      $region75: #{hourglass1_forward.1} parent=71 // pred_region
        %p540 = scmp.lt.s32.totalorder %s26, 1
        %s541 = scalar_select %p540, %s26, 1
        %s542 = smul.addr %s541, 2
        %s543 = smul.addr %s542, 8
        %s544 = scalar_lea.vmem %s0, %s543
      $region76: #{hourglass1_forward.1} parent=71 // pred_fallthru
        _
      // Predicated region
      $region77: #{hourglass1_forward.1} parent=71 // pred_check
        %p545 = pneg %p72
      $region78: #{hourglass1_forward.1} parent=71 // pred_check_branch
        %547 = sbr.rel (%p545) target = $region80
      $region79: #{hourglass1_forward.1} parent=71 // pred_region
        %p548 = scmp.lt.s32.totalorder %s26, 1
        %s549 = scalar_select %p548, %s26, 1
        %s550 = smul.addr %s549, 8
        %s551 = scalar_lea.vmem %s1, %s550
      $region80: #{hourglass1_forward.1} parent=71 // pred_fallthru
        _
      // Predicated region
      $region81: #{hourglass1_forward.1} parent=71 // pred_check
        %p552 = pneg %p98
      $region82: #{hourglass1_forward.1} parent=71 // pred_check_branch
        %554 = sbr.rel (%p552) target = $region84
      $region83: #{hourglass1_forward.1} parent=71 // pred_region
        %p555 = scmp.lt.s32.totalorder %s26, 1
        %s556 = scalar_select %p555, %s26, 1
        %s557 = smul.addr %s556, 4
        %s558 = scalar_lea.vmem %s2, %s557
      $region84: #{hourglass1_forward.1} parent=71 // pred_fallthru
        _
    $region72: #{hourglass1_forward.1} parent=5 // pred_fallthru
      _
    %p559 = scmp.le.s32.totalorder 1, %s26
    %p560 = scmp.lt.s32.totalorder %s26, 3
    %p561 = pnand %p559, %p560
    %p562 = pneg %p561
    // Predicated region
    $region85: #{hourglass1_forward.1} parent=5 // pred_check
      _
    $region86: #{hourglass1_forward.1} parent=5 // pred_check_branch
      %564 = sbr.rel (%p561) target = $region88
    $region87: #{hourglass1_forward.1} parent=5 // pred_region
      %s565 = ssub.s32 %s26, 1
      %p566 = scmp.lt.s32.totalorder %s31, 1
      %s567 = scalar_select %p566, %s31, 1
      %s568 = smul.addr %s567, 2
      %s569 = smul.addr %s568, 8
      %s570 = scalar_lea.vmem %s0, %s569
      %p571 = pneg %p52
      %p572 = pneg %p49
      %p573 = scmp.lt.s32.totalorder %s31, 1
      %s574 = scalar_select %p573, %s31, 1
      %s575 = smul.addr %s574, 8
      %s576 = scalar_lea.vmem %s1, %s575
      %p577 = pneg %p78
      %p578 = pneg %p75
      %p579 = scmp.lt.s32.totalorder %s31, 1
      %s580 = scalar_select %p579, %s31, 1
      %s581 = smul.addr %s580, 4
      %s582 = scalar_lea.vmem %s2, %s581
      %p583 = pneg %p104
      %p584 = pneg %p101
      %p585 = pneg %p125
      %p586 = pneg %p122
      %p587 = pneg %p146
      %p588 = pneg %p143
      %p589 = pneg %p167
      %p590 = pneg %p164
      %p591 = pneg %p188
      %p592 = pneg %p185
      %p593 = pneg %p209
      %p594 = pneg %p206
      %p595 = pneg %p230
      %p596 = pneg %p227
      %p597 = pneg %p251
      %p598 = pneg %p248
      %p599 = pneg %p272
      %p600 = pneg %p269
      %p601 = pneg %p293
      %p602 = pneg %p290
      %p603 = pneg %p314
      %p604 = pneg %p311
      %p605 = pneg %p335
      %p606 = pneg %p332
      %p607 = pneg %p356
      %p608 = pneg %p353
      %p609 = pneg %p377
      %p610 = pneg %p374
      %p611 = pneg %p398
      %p612 = pneg %p395
      %p613 = pneg %p424
      %p614 = pneg %p421
      %p615 = scmp.lt.s32.totalorder %s31, 1
      %s616 = scalar_select %p615, %s31, 1
      %s617 = smul.addr %s616, 2
      %s618 = smul.addr %s617, 8
      %s619 = scalar_lea.vmem %s17, %s618
      %p620 = pneg %p450
      %p621 = pneg %p447
      %p622 = scmp.lt.s32.totalorder %s31, 1
      %s623 = scalar_select %p622, %s31, 1
      %s624 = smul.addr %s623, 8
      %s625 = scalar_lea.vmem %s18, %s624
      %p626 = pneg %p476
      %p627 = pneg %p473
      %p628 = scmp.lt.s32.totalorder %s31, 1
      %s629 = scalar_select %p628, %s31, 1
      %s630 = smul.addr %s629, 4
      %s631 = scalar_lea.vmem %s19, %s630
      %p632 = scmp.lt.s32.totalorder %s31, 1
      %s633 = scalar_select %p632, %s31, 1
      %s634 = smul.addr %s633, 2
      %s635 = smul.addr %s634, 8
      %s636 = scalar_lea.vmem %s0, %s635
      %p637 = scmp.lt.s32.totalorder %s31, 1
      %s638 = scalar_select %p637, %s31, 1
      %s639 = smul.addr %s638, 8
      %s640 = scalar_lea.vmem %s1, %s639
      %p641 = scmp.lt.s32.totalorder %s31, 1
      %s642 = scalar_select %p641, %s31, 1
      %s643 = smul.addr %s642, 4
      %s644 = scalar_lea.vmem %s2, %s643
      %p645 = scmp.lt.s32.totalorder %s31, 1
      %s646 = scalar_select %p645, %s31, 1
      %s647 = smul.addr %s646, 2
      %s648 = smul.addr %s647, 8
      %s649 = scalar_lea.vmem %s17, %s648
      %p650 = scmp.lt.s32.totalorder %s31, 1
      %s651 = scalar_select %p650, %s31, 1
      %s652 = smul.addr %s651, 8
      %s653 = scalar_lea.vmem %s18, %s652
      %p654 = scmp.lt.s32.totalorder %s31, 1
      %s655 = scalar_select %p654, %s31, 1
      %s656 = smul.addr %s655, 4
      %s657 = scalar_lea.vmem %s19, %s656
      %v659 = vld [vmem:[%s636] sm:$0xff]
      %v660 = vld [vmem:[%s636 + $0x8] sm:$0xff]
      %v661 = vld [vmem:[%s640] sm:$0xff]
      %v662 = vld [vmem:[%s644] sm:$0xf]
      %v663 = vld [vmem:[%s3] sm:$0xf]
      %v664 = vld [vmem:[%s3 + $0x4] sm:$0xf]
      %v665 = vld [vmem:[%s3 + $0x8] sm:$0xf]
      %v666 = vld [vmem:[%s4] sm:$0xf]
      %v667 = vld [vmem:[%s4 + $0x4] sm:$0xf]
      %v668 = vld [vmem:[%s4 + $0x8] sm:$0xf]
      %v669 = vld [vmem:[%s4 + $0xc] sm:$0xf]
      %v670 = vld [vmem:[%s4 + $0x10] sm:$0xf]
      %v671 = vld [vmem:[%s4 + $0x14] sm:$0xf]
      %v672 = vld [vmem:[%s4 + $0x18] sm:$0xf]
      %v673 = vld [vmem:[%s4 + $0x1c] sm:$0xf]
      %v674 = vld [vmem:[%s4 + $0x20] sm:$0xf]
      %v675 = vld [vmem:[%s4 + $0x24] sm:$0xf]
      %v676 = vld [vmem:[%s4 + $0x28] sm:$0xf]
      %v677 = vld [vmem:[%s4 + $0x2c] sm:$0xf]
      %v678 = vld [vmem:[%s4 + $0x30] sm:$0xf]
      %v679 = vld [vmem:[%s4 + $0x34] sm:$0xf]
      %v680 = vld [vmem:[%s4 + $0x38] sm:$0xf]
      %v681 = vld [vmem:[%s4 + $0x3c] sm:$0xf]
      %v682 = vld [vmem:[%s4 + $0x40] sm:$0xf]
      %v683 = vld [vmem:[%s4 + $0x44] sm:$0xf]
      %v684 = vld [vmem:[%s4 + $0x48] sm:$0xf]
      %v685 = vld [vmem:[%s4 + $0x4c] sm:$0xf]
      %v686 = vld [vmem:[%s4 + $0x50] sm:$0xf]
      %v687 = vld [vmem:[%s4 + $0x54] sm:$0xf]
      %v688 = vld [vmem:[%s4 + $0x58] sm:$0xf]
      %v689 = vld [vmem:[%s4 + $0x5c] sm:$0xf]
      %v690 = vpack.c.bf16 %v660, %v659
      %v694 = vunpack.c.l.b16 %v663
      %v695 = vunpack.c.l.b16 %v664
      %v696 = vunpack.c.l.b16 %v665
      %v697 = vpack.c.b16 %v695, %v694
      %v698 = vpack.c.b16 %v696, %v696
      %vm699 = vcmask 130048
      %v701 = vsel %vm699, %v697, 0
      %v704 = vsel %vm699, %v698, 0
      %706 = vmatpush.bf16.msra.mxu0 0
      %707 = vmatpush.bf16.msra.mxu0 0
      %708 = vmatpush.bf16.msra.mxu0 0
      %709 = vmatpush.bf16.msra.mxu0 0
      %710 = vmatpush.bf16.msra.mxu0 0
      %711 = vmatpush.bf16.msra.mxu0 0
      %712 = vmatpush.bf16.msra.mxu0 0
      %713 = vmatpush.bf16.msra.mxu0 %v690
      %714 = vmatmul.bf16.gmra.mxu0 %v701
      %v715 = vpop.f32.mrf.mxu0
      %v716 = vadd.f32 0.0, %v715
      %v717 = vpop.f32.mrf.mxu0
      %v718 = vadd.f32 0.0, %v717
      %719 = vmatmul.bf16.gmra.mxu0 %v704
      %v720 = vpop.f32.mrf.mxu0
      %v721 = vadd.f32 0.0, %v720
      %v722 = vpop.f32.mrf.mxu0
      %723 = vdwg.mxu0
      %v724 = vpack.c.bf16 %v716, %v716
      %v725 = vpack.c.bf16 %v718, %v718
      %v726 = vpack.c.bf16 %v721, %v721
      %v735 = vunpack.c.l.b16 %v674
      %v736 = vunpack.c.l.b16 %v675
      %v737 = vunpack.c.l.b16 %v676
      %v738 = vunpack.c.l.b16 %v677
      %v739 = vunpack.c.l.b16 %v678
      %v740 = vunpack.c.l.b16 %v679
      %v741 = vunpack.c.l.b16 %v680
      %v742 = vunpack.c.l.b16 %v681
      %v743 = vpack.c.b16 %v736, %v735
      %v744 = vpack.c.b16 %v738, %v737
      %v745 = vpack.c.b16 %v740, %v739
      %v746 = vpack.c.b16 %v742, %v741
      %vm751 = vcmask 523264
      %v753 = vsel %vm751, %v725, 0
      %755 = vmatpush.bf16.msra.mxu0 0
      %756 = vmatpush.bf16.msra.mxu0 0
      %757 = vmatpush.bf16.msra.mxu0 0
      %758 = vmatpush.bf16.msra.mxu0 0
      %759 = vmatpush.bf16.msra.mxu0 %v746
      %760 = vmatpush.bf16.msra.mxu0 %v745
      %761 = vmatpush.bf16.msra.mxu0 %v744
      %762 = vmatpush.bf16.msra.mxu0 %v743
      %763 = vmatmul.bf16.gmra.mxu0 %v753
      %v764 = vpop.f32.mrf.mxu0
      %v765 = vadd.f32 0.0, %v764
      %v766 = vpop.f32.mrf.mxu0
      %767 = vdwg.mxu0
      %v776 = vunpack.c.l.b16 %v666
      %v777 = vunpack.c.l.b16 %v667
      %v778 = vunpack.c.l.b16 %v668
      %v779 = vunpack.c.l.b16 %v669
      %v780 = vunpack.c.l.b16 %v670
      %v781 = vunpack.c.l.b16 %v671
      %v782 = vunpack.c.l.b16 %v672
      %v783 = vunpack.c.l.b16 %v673
      %v784 = vpack.c.b16 %v777, %v776
      %v785 = vpack.c.b16 %v779, %v778
      %v786 = vpack.c.b16 %v781, %v780
      %v787 = vpack.c.b16 %v783, %v782
      %v793 = vsel %vm751, %v724, 0
      %795 = vmatpush.bf16.msra.mxu0 0
      %796 = vmatpush.bf16.msra.mxu0 0
      %797 = vmatpush.bf16.msra.mxu0 0
      %798 = vmatpush.bf16.msra.mxu0 0
      %799 = vmatpush.bf16.msra.mxu0 %v787
      %800 = vmatpush.bf16.msra.mxu0 %v786
      %801 = vmatpush.bf16.msra.mxu0 %v785
      %802 = vmatpush.bf16.msra.mxu0 %v784
      %803 = vmatmul.bf16.gmra.mxu0 %v793
      %v804 = vpop.f32.mrf.mxu0
      %v805 = vadd.f32 %v765, %v804
      %v806 = vpop.f32.mrf.mxu0
      %807 = vdwg.mxu0
      %v816 = vunpack.c.l.b16 %v682
      %v817 = vunpack.c.l.b16 %v683
      %v818 = vunpack.c.l.b16 %v684
      %v819 = vunpack.c.l.b16 %v685
      %v820 = vunpack.c.l.b16 %v686
      %v821 = vunpack.c.l.b16 %v687
      %v822 = vunpack.c.l.b16 %v688
      %v823 = vunpack.c.l.b16 %v689
      %v824 = vpack.c.b16 %v817, %v816
      %v825 = vpack.c.b16 %v819, %v818
      %v826 = vpack.c.b16 %v821, %v820
      %v827 = vpack.c.b16 %v823, %v822
      %v833 = vsel %vm751, %v726, 0
      %835 = vmatpush.bf16.msra.mxu0 0
      %836 = vmatpush.bf16.msra.mxu0 0
      %837 = vmatpush.bf16.msra.mxu0 0
      %838 = vmatpush.bf16.msra.mxu0 0
      %839 = vmatpush.bf16.msra.mxu0 %v827
      %840 = vmatpush.bf16.msra.mxu0 %v826
      %841 = vmatpush.bf16.msra.mxu0 %v825
      %842 = vmatpush.bf16.msra.mxu0 %v824
      %843 = vmatmul.bf16.gmra.mxu0 %v833
      %v844 = vpop.f32.mrf.mxu0
      %v845 = vadd.f32 0.0, %v844
      %v846 = vpop.f32.mrf.mxu0
      %847 = vdwg.mxu0
      %v848 = vadd.f32 %v805, %v845
      %v849 = vmax.f32 %v848, 0.0
      %v850 = vld [vmem:[%s5] sm:$0xf]
      %v851 = vld [vmem:[%s5 + $0x4] sm:$0xf]
      %v852 = vld [vmem:[%s5 + $0x8] sm:$0xf]
      %v853 = vld [vmem:[%s6] sm:$0xf]
      %v854 = vld [vmem:[%s6 + $0x4] sm:$0xf]
      %v855 = vld [vmem:[%s6 + $0x8] sm:$0xf]
      %v856 = vld [vmem:[%s6 + $0xc] sm:$0xf]
      %v857 = vld [vmem:[%s6 + $0x10] sm:$0xf]
      %v858 = vld [vmem:[%s6 + $0x14] sm:$0xf]
      %v859 = vld [vmem:[%s6 + $0x18] sm:$0xf]
      %v860 = vld [vmem:[%s6 + $0x1c] sm:$0xf]
      %v861 = vld [vmem:[%s6 + $0x20] sm:$0xf]
      %v862 = vld [vmem:[%s6 + $0x24] sm:$0xf]
      %v863 = vld [vmem:[%s6 + $0x28] sm:$0xf]
      %v864 = vld [vmem:[%s6 + $0x2c] sm:$0xf]
      %v865 = vpack.c.bf16 %v849, %v849
      %v869 = vunpack.c.l.b16 %v850
      %v870 = vunpack.c.l.b16 %v851
      %v871 = vunpack.c.l.b16 %v852
      %v872 = vpack.c.b16 %v870, %v869
      %v873 = vpack.c.b16 %v871, %v871
      %vm874 = vcmask 64512
      %v876 = vsel %vm874, %v872, 0
      %v879 = vsel %vm874, %v873, 0
      %vm881 = vcmask 1043456
      %v883 = vsel %vm881, %v865, 0
      %885 = vmatpush.bf16.msra.mxu0 0
      %886 = vmatpush.bf16.msra.mxu0 0
      %887 = vmatpush.bf16.msra.mxu0 0
      %888 = vmatpush.bf16.msra.mxu0 0
      %889 = vmatpush.bf16.msra.mxu0 0
      %890 = vmatpush.bf16.msra.mxu0 0
      %891 = vmatpush.bf16.msra.mxu0 0
      %892 = vmatpush.bf16.msra.mxu0 %v883
      %893 = vmatmul.bf16.gmra.mxu0 %v876
      %v894 = vpop.f32.mrf.mxu0
      %v895 = vadd.f32 0.0, %v894
      %v896 = vpop.f32.mrf.mxu0
      %v897 = vadd.f32 0.0, %v896
      %898 = vmatmul.bf16.gmra.mxu0 %v879
      %v899 = vpop.f32.mrf.mxu0
      %v900 = vadd.f32 0.0, %v899
      %v901 = vpop.f32.mrf.mxu0
      %902 = vdwg.mxu0
      %v903 = vpack.c.bf16 %v895, %v895
      %v904 = vpack.c.bf16 %v897, %v897
      %v905 = vpack.c.bf16 %v900, %v900
      %v910 = vunpack.c.l.b16 %v857
      %v911 = vunpack.c.l.b16 %v858
      %v912 = vunpack.c.l.b16 %v859
      %v913 = vunpack.c.l.b16 %v860
      %v914 = vpack.c.b16 %v911, %v910
      %v915 = vpack.c.b16 %v913, %v912
      %vm918 = vcmask 261120
      %v920 = vsel %vm918, %v904, 0
      %922 = vmatpush.bf16.msra.mxu0 0
      %923 = vmatpush.bf16.msra.mxu0 0
      %924 = vmatpush.bf16.msra.mxu0 0
      %925 = vmatpush.bf16.msra.mxu0 0
      %926 = vmatpush.bf16.msra.mxu0 0
      %927 = vmatpush.bf16.msra.mxu0 0
      %928 = vmatpush.bf16.msra.mxu0 %v915
      %929 = vmatpush.bf16.msra.mxu0 %v914
      %930 = vmatmul.bf16.gmra.mxu0 %v920
      %v931 = vpop.f32.mrf.mxu0
      %v932 = vadd.f32 0.0, %v931
      %v933 = vpop.f32.mrf.mxu0
      %934 = vdwg.mxu0
      %v939 = vunpack.c.l.b16 %v853
      %v940 = vunpack.c.l.b16 %v854
      %v941 = vunpack.c.l.b16 %v855
      %v942 = vunpack.c.l.b16 %v856
      %v943 = vpack.c.b16 %v940, %v939
      %v944 = vpack.c.b16 %v942, %v941
      %v948 = vsel %vm918, %v903, 0
      %950 = vmatpush.bf16.msra.mxu0 0
      %951 = vmatpush.bf16.msra.mxu0 0
      %952 = vmatpush.bf16.msra.mxu0 0
      %953 = vmatpush.bf16.msra.mxu0 0
      %954 = vmatpush.bf16.msra.mxu0 0
      %955 = vmatpush.bf16.msra.mxu0 0
      %956 = vmatpush.bf16.msra.mxu0 %v944
      %957 = vmatpush.bf16.msra.mxu0 %v943
      %958 = vmatmul.bf16.gmra.mxu0 %v948
      %v959 = vpop.f32.mrf.mxu0
      %v960 = vadd.f32 %v932, %v959
      %v961 = vpop.f32.mrf.mxu0
      %962 = vdwg.mxu0
      %v967 = vunpack.c.l.b16 %v861
      %v968 = vunpack.c.l.b16 %v862
      %v969 = vunpack.c.l.b16 %v863
      %v970 = vunpack.c.l.b16 %v864
      %v971 = vpack.c.b16 %v968, %v967
      %v972 = vpack.c.b16 %v970, %v969
      %v976 = vsel %vm918, %v905, 0
      %978 = vmatpush.bf16.msra.mxu0 0
      %979 = vmatpush.bf16.msra.mxu0 0
      %980 = vmatpush.bf16.msra.mxu0 0
      %981 = vmatpush.bf16.msra.mxu0 0
      %982 = vmatpush.bf16.msra.mxu0 0
      %983 = vmatpush.bf16.msra.mxu0 0
      %984 = vmatpush.bf16.msra.mxu0 %v972
      %985 = vmatpush.bf16.msra.mxu0 %v971
      %986 = vmatmul.bf16.gmra.mxu0 %v976
      %v987 = vpop.f32.mrf.mxu0
      %v988 = vadd.f32 0.0, %v987
      %v989 = vpop.f32.mrf.mxu0
      %990 = vdwg.mxu0
      %v991 = vadd.f32 %v960, %v988
      %v992 = vmax.f32 %v991, 0.0
      %994 = vrot.lane.b32.xlu0 %v661, 32
      %v995 = vpop.permute.xlu0 %994
      %v997 = vsel %vm918, %v992, %v995
      %998 = vst.msk [vmem:[%s653] sm:$0xff] %vm751, %v997
      %v999 = vld [vmem:[%s7] sm:$0xf]
      %v1000 = vld [vmem:[%s7 + $0x4] sm:$0x3]
      %v1001 = vld [vmem:[%s8] sm:$0xf]
      %v1002 = vld [vmem:[%s8 + $0x4] sm:$0xf]
      %v1003 = vld [vmem:[%s8 + $0x8] sm:$0xf]
      %v1004 = vld [vmem:[%s8 + $0xc] sm:$0xf]
      %v1005 = vld [vmem:[%s8 + $0x10] sm:$0xf]
      %v1006 = vld [vmem:[%s8 + $0x14] sm:$0xf]
      %v1007 = vld [vmem:[%s8 + $0x18] sm:$0xf]
      %v1008 = vld [vmem:[%s8 + $0x1c] sm:$0xf]
      %v1009 = vld [vmem:[%s8 + $0x20] sm:$0xf]
      %v1010 = vld [vmem:[%s8 + $0x24] sm:$0xf]
      %v1011 = vld [vmem:[%s8 + $0x28] sm:$0xf]
      %v1012 = vld [vmem:[%s8 + $0x2c] sm:$0xf]
      %v1013 = vld [vmem:[%s8 + $0x30] sm:$0xf]
      %v1014 = vld [vmem:[%s8 + $0x34] sm:$0xf]
      %v1015 = vld [vmem:[%s8 + $0x38] sm:$0xf]
      %v1016 = vld [vmem:[%s8 + $0x3c] sm:$0xf]
      %v1017 = vld [vmem:[%s8 + $0x40] sm:$0xf]
      %v1018 = vld [vmem:[%s8 + $0x44] sm:$0xf]
      %v1019 = vld [vmem:[%s8 + $0x48] sm:$0xf]
      %v1020 = vld [vmem:[%s8 + $0x4c] sm:$0xf]
      %v1021 = vld [vmem:[%s8 + $0x50] sm:$0xf]
      %v1022 = vld [vmem:[%s8 + $0x54] sm:$0xf]
      %v1023 = vld [vmem:[%s8 + $0x58] sm:$0xf]
      %v1024 = vld [vmem:[%s8 + $0x5c] sm:$0xf]
      %v1025 = vpack.c.bf16 %v997, %v997
      %v1028 = vunpack.c.l.b16 %v999
      %v1029 = vunpack.c.l.b16 %v1000
      %v1030 = vpack.c.b16 %v1029, %v1028
      %v1032 = vsel %vm874, %v1030, 0
      %v1035 = vsel %vm881, %v1025, 0
      %1037 = vmatpush.bf16.msra.mxu0 0
      %1038 = vmatpush.bf16.msra.mxu0 0
      %1039 = vmatpush.bf16.msra.mxu0 0
      %1040 = vmatpush.bf16.msra.mxu0 0
      %1041 = vmatpush.bf16.msra.mxu0 0
      %1042 = vmatpush.bf16.msra.mxu0 0
      %1043 = vmatpush.bf16.msra.mxu0 0
      %1044 = vmatpush.bf16.msra.mxu0 %v1035
      %1045 = vmatmul.bf16.gmra.mxu0 %v1032
      %v1046 = vpop.f32.mrf.mxu0
      %v1047 = vadd.f32 0.0, %v1046
      %v1048 = vpop.f32.mrf.mxu0
      %v1049 = vadd.f32 0.0, %v1048
      %1050 = vdwg.mxu0
      %v1051 = vpack.c.bf16 %v1047, %v1047
      %v1052 = vpack.c.bf16 %v1049, %v1049
      %v1054 = vunpack.c.l.b16 %v1051
      %v1055 = vpack.c.b16 %v1054, %v1054
      %v1056 = vrot.slane %v1055, 2
      %v1065 = vunpack.c.l.b16 %v1009
      %v1066 = vunpack.c.l.b16 %v1010
      %v1067 = vunpack.c.l.b16 %v1011
      %v1068 = vunpack.c.l.b16 %v1012
      %v1069 = vunpack.c.l.b16 %v1013
      %v1070 = vunpack.c.l.b16 %v1014
      %v1071 = vunpack.c.l.b16 %v1015
      %v1072 = vunpack.c.l.b16 %v1016
      %v1073 = vpack.c.b16 %v1066, %v1065
      %v1074 = vpack.c.b16 %v1068, %v1067
      %v1075 = vpack.c.b16 %v1070, %v1069
      %v1076 = vpack.c.b16 %v1072, %v1071
      %v1082 = vsel %vm751, %v1056, 0
      %1084 = vmatpush.bf16.msra.mxu0 0
      %1085 = vmatpush.bf16.msra.mxu0 0
      %1086 = vmatpush.bf16.msra.mxu0 0
      %1087 = vmatpush.bf16.msra.mxu0 0
      %1088 = vmatpush.bf16.msra.mxu0 %v1076
      %1089 = vmatpush.bf16.msra.mxu0 %v1075
      %1090 = vmatpush.bf16.msra.mxu0 %v1074
      %1091 = vmatpush.bf16.msra.mxu0 %v1073
      %1092 = vmatmul.bf16.gmra.mxu0 %v1082
      %v1093 = vpop.f32.mrf.mxu0
      %v1094 = vadd.f32 0.0, %v1093
      %v1095 = vpop.f32.mrf.mxu0
      %1096 = vdwg.mxu0
      %v1105 = vunpack.c.l.b16 %v1001
      %v1106 = vunpack.c.l.b16 %v1002
      %v1107 = vunpack.c.l.b16 %v1003
      %v1108 = vunpack.c.l.b16 %v1004
      %v1109 = vunpack.c.l.b16 %v1005
      %v1110 = vunpack.c.l.b16 %v1006
      %v1111 = vunpack.c.l.b16 %v1007
      %v1112 = vunpack.c.l.b16 %v1008
      %v1113 = vpack.c.b16 %v1106, %v1105
      %v1114 = vpack.c.b16 %v1108, %v1107
      %v1115 = vpack.c.b16 %v1110, %v1109
      %v1116 = vpack.c.b16 %v1112, %v1111
      %v1122 = vsel %vm751, %v1051, 0
      %1124 = vmatpush.bf16.msra.mxu0 0
      %1125 = vmatpush.bf16.msra.mxu0 0
      %1126 = vmatpush.bf16.msra.mxu0 0
      %1127 = vmatpush.bf16.msra.mxu0 0
      %1128 = vmatpush.bf16.msra.mxu0 %v1116
      %1129 = vmatpush.bf16.msra.mxu0 %v1115
      %1130 = vmatpush.bf16.msra.mxu0 %v1114
      %1131 = vmatpush.bf16.msra.mxu0 %v1113
      %1132 = vmatmul.bf16.gmra.mxu0 %v1122
      %v1133 = vpop.f32.mrf.mxu0
      %v1134 = vadd.f32 %v1094, %v1133
      %v1135 = vpop.f32.mrf.mxu0
      %1136 = vdwg.mxu0
      %v1145 = vunpack.c.l.b16 %v1017
      %v1146 = vunpack.c.l.b16 %v1018
      %v1147 = vunpack.c.l.b16 %v1019
      %v1148 = vunpack.c.l.b16 %v1020
      %v1149 = vunpack.c.l.b16 %v1021
      %v1150 = vunpack.c.l.b16 %v1022
      %v1151 = vunpack.c.l.b16 %v1023
      %v1152 = vunpack.c.l.b16 %v1024
      %v1153 = vpack.c.b16 %v1146, %v1145
      %v1154 = vpack.c.b16 %v1148, %v1147
      %v1155 = vpack.c.b16 %v1150, %v1149
      %v1156 = vpack.c.b16 %v1152, %v1151
      %v1162 = vsel %vm751, %v1052, 0
      %1164 = vmatpush.bf16.msra.mxu0 0
      %1165 = vmatpush.bf16.msra.mxu0 0
      %1166 = vmatpush.bf16.msra.mxu0 0
      %1167 = vmatpush.bf16.msra.mxu0 0
      %1168 = vmatpush.bf16.msra.mxu0 %v1156
      %1169 = vmatpush.bf16.msra.mxu0 %v1155
      %1170 = vmatpush.bf16.msra.mxu0 %v1154
      %1171 = vmatpush.bf16.msra.mxu0 %v1153
      %1172 = vmatmul.bf16.gmra.mxu0 %v1162
      %v1173 = vpop.f32.mrf.mxu0
      %v1174 = vadd.f32 0.0, %v1173
      %v1175 = vpop.f32.mrf.mxu0
      %1176 = vdwg.mxu0
      %v1177 = vadd.f32 %v1134, %v1174
      %v1178 = vmax.f32 %v1177, 0.0
      %v1179 = vld [vmem:[%s9] sm:$0xf]
      %v1180 = vld [vmem:[%s9 + $0x4] sm:$0x3]
      %v1181 = vld [vmem:[%s10] sm:$0xf]
      %v1182 = vld [vmem:[%s10 + $0x4] sm:$0xf]
      %v1183 = vld [vmem:[%s10 + $0x8] sm:$0xf]
      %v1184 = vld [vmem:[%s10 + $0xc] sm:$0xf]
      %v1185 = vld [vmem:[%s10 + $0x10] sm:$0xf]
      %v1186 = vld [vmem:[%s10 + $0x14] sm:$0xf]
      %v1187 = vld [vmem:[%s10 + $0x18] sm:$0xf]
      %v1188 = vld [vmem:[%s10 + $0x1c] sm:$0xf]
      %v1189 = vld [vmem:[%s10 + $0x20] sm:$0xf]
      %v1190 = vld [vmem:[%s10 + $0x24] sm:$0xf]
      %v1191 = vld [vmem:[%s10 + $0x28] sm:$0xf]
      %v1192 = vld [vmem:[%s10 + $0x2c] sm:$0xf]
      %v1193 = vpack.c.bf16 %v1178, %v1178
      %v1196 = vunpack.c.l.b16 %v1179
      %v1197 = vunpack.c.l.b16 %v1180
      %v1198 = vpack.c.b16 %v1197, %v1196
      %vm1199 = vcmask 31744
      %v1201 = vsel %vm1199, %v1198, 0
      %vm1203 = vcmask 1041408
      %v1205 = vsel %vm1203, %v1193, 0
      %1207 = vmatpush.bf16.msra.mxu0 0
      %1208 = vmatpush.bf16.msra.mxu0 0
      %1209 = vmatpush.bf16.msra.mxu0 0
      %1210 = vmatpush.bf16.msra.mxu0 0
      %1211 = vmatpush.bf16.msra.mxu0 0
      %1212 = vmatpush.bf16.msra.mxu0 0
      %1213 = vmatpush.bf16.msra.mxu0 0
      %1214 = vmatpush.bf16.msra.mxu0 %v1205
      %1215 = vmatmul.bf16.gmra.mxu0 %v1201
      %v1216 = vpop.f32.mrf.mxu0
      %v1217 = vadd.f32 0.0, %v1216
      %v1218 = vpop.f32.mrf.mxu0
      %v1219 = vadd.f32 0.0, %v1218
      %1220 = vdwg.mxu0
      %v1221 = vpack.c.bf16 %v1217, %v1217
      %v1222 = vpack.c.bf16 %v1219, %v1219
      %v1224 = vunpack.c.l.b16 %v1221
      %v1225 = vpack.c.b16 %v1224, %v1224
      %v1226 = vrot.slane %v1225, 2
      %v1231 = vunpack.c.l.b16 %v1185
      %v1232 = vunpack.c.l.b16 %v1186
      %v1233 = vunpack.c.l.b16 %v1187
      %v1234 = vunpack.c.l.b16 %v1188
      %v1235 = vpack.c.b16 %v1232, %v1231
      %v1236 = vpack.c.b16 %v1234, %v1233
      %v1240 = vsel %vm918, %v1226, 0
      %1242 = vmatpush.bf16.msra.mxu0 0
      %1243 = vmatpush.bf16.msra.mxu0 0
      %1244 = vmatpush.bf16.msra.mxu0 0
      %1245 = vmatpush.bf16.msra.mxu0 0
      %1246 = vmatpush.bf16.msra.mxu0 0
      %1247 = vmatpush.bf16.msra.mxu0 0
      %1248 = vmatpush.bf16.msra.mxu0 %v1236
      %1249 = vmatpush.bf16.msra.mxu0 %v1235
      %1250 = vmatmul.bf16.gmra.mxu0 %v1240
      %v1251 = vpop.f32.mrf.mxu0
      %v1252 = vadd.f32 0.0, %v1251
      %v1253 = vpop.f32.mrf.mxu0
      %1254 = vdwg.mxu0
      %v1259 = vunpack.c.l.b16 %v1181
      %v1260 = vunpack.c.l.b16 %v1182
      %v1261 = vunpack.c.l.b16 %v1183
      %v1262 = vunpack.c.l.b16 %v1184
      %v1263 = vpack.c.b16 %v1260, %v1259
      %v1264 = vpack.c.b16 %v1262, %v1261
      %v1268 = vsel %vm918, %v1221, 0
      %1270 = vmatpush.bf16.msra.mxu0 0
      %1271 = vmatpush.bf16.msra.mxu0 0
      %1272 = vmatpush.bf16.msra.mxu0 0
      %1273 = vmatpush.bf16.msra.mxu0 0
      %1274 = vmatpush.bf16.msra.mxu0 0
      %1275 = vmatpush.bf16.msra.mxu0 0
      %1276 = vmatpush.bf16.msra.mxu0 %v1264
      %1277 = vmatpush.bf16.msra.mxu0 %v1263
      %1278 = vmatmul.bf16.gmra.mxu0 %v1268
      %v1279 = vpop.f32.mrf.mxu0
      %v1280 = vadd.f32 %v1252, %v1279
      %v1281 = vpop.f32.mrf.mxu0
      %1282 = vdwg.mxu0
      %v1287 = vunpack.c.l.b16 %v1189
      %v1288 = vunpack.c.l.b16 %v1190
      %v1289 = vunpack.c.l.b16 %v1191
      %v1290 = vunpack.c.l.b16 %v1192
      %v1291 = vpack.c.b16 %v1288, %v1287
      %v1292 = vpack.c.b16 %v1290, %v1289
      %v1296 = vsel %vm918, %v1222, 0
      %1298 = vmatpush.bf16.msra.mxu0 0
      %1299 = vmatpush.bf16.msra.mxu0 0
      %1300 = vmatpush.bf16.msra.mxu0 0
      %1301 = vmatpush.bf16.msra.mxu0 0
      %1302 = vmatpush.bf16.msra.mxu0 0
      %1303 = vmatpush.bf16.msra.mxu0 0
      %1304 = vmatpush.bf16.msra.mxu0 %v1292
      %1305 = vmatpush.bf16.msra.mxu0 %v1291
      %1306 = vmatmul.bf16.gmra.mxu0 %v1296
      %v1307 = vpop.f32.mrf.mxu0
      %v1308 = vadd.f32 0.0, %v1307
      %v1309 = vpop.f32.mrf.mxu0
      %1310 = vdwg.mxu0
      %v1311 = vadd.f32 %v1280, %v1308
      %v1312 = vmax.f32 %v1311, 0.0
      %1314 = vrot.lane.b32.xlu0 %v662, 32
      %v1315 = vpop.permute.xlu0 %1314
      %v1317 = vsel %vm918, %v1312, %v1315
      %vm1318 = vcmask 519168
      %1319 = vst.msk [vmem:[%s657] sm:$0xf] %vm1318, %v1317
      %v1320 = vld [vmem:[%s11] sm:$0xf]
      %v1321 = vld [vmem:[%s11 + $0x4] sm:$0xf]
      %v1322 = vld [vmem:[%s11 + $0x8] sm:$0xf]
      %v1323 = vld [vmem:[%s12] sm:$0xf]
      %v1324 = vld [vmem:[%s12 + $0x4] sm:$0xf]
      %v1325 = vld [vmem:[%s12 + $0x8] sm:$0xf]
      %v1326 = vld [vmem:[%s12 + $0xc] sm:$0xf]
      %v1327 = vld [vmem:[%s12 + $0x10] sm:$0xf]
      %v1328 = vld [vmem:[%s12 + $0x14] sm:$0xf]
      %v1329 = vld [vmem:[%s12 + $0x18] sm:$0xf]
      %v1330 = vld [vmem:[%s12 + $0x1c] sm:$0xf]
      %v1331 = vld [vmem:[%s12 + $0x20] sm:$0xf]
      %v1332 = vld [vmem:[%s12 + $0x24] sm:$0xf]
      %v1333 = vld [vmem:[%s12 + $0x28] sm:$0xf]
      %v1334 = vld [vmem:[%s12 + $0x2c] sm:$0xf]
      %v1335 = vld [vmem:[%s12 + $0x30] sm:$0xf]
      %v1336 = vld [vmem:[%s12 + $0x34] sm:$0xf]
      %v1337 = vld [vmem:[%s12 + $0x38] sm:$0xf]
      %v1338 = vld [vmem:[%s12 + $0x3c] sm:$0xf]
      %v1339 = vld [vmem:[%s12 + $0x40] sm:$0xf]
      %v1340 = vld [vmem:[%s12 + $0x44] sm:$0xf]
      %v1341 = vld [vmem:[%s12 + $0x48] sm:$0xf]
      %v1342 = vld [vmem:[%s12 + $0x4c] sm:$0xf]
      %v1343 = vld [vmem:[%s12 + $0x50] sm:$0xf]
      %v1344 = vld [vmem:[%s12 + $0x54] sm:$0xf]
      %v1345 = vld [vmem:[%s12 + $0x58] sm:$0xf]
      %v1346 = vld [vmem:[%s12 + $0x5c] sm:$0xf]
      %v1347 = vld [vmem:[%s13] sm:$0x1]
      %v1348 = vpack.c.bf16 %v1317, %v1317
      %v1352 = vunpack.c.l.b16 %v1320
      %v1353 = vunpack.c.l.b16 %v1321
      %v1354 = vunpack.c.l.b16 %v1322
      %v1355 = vpack.c.b16 %v1353, %v1352
      %v1356 = vpack.c.b16 %v1354, %v1354
      %v1358 = vsel %vm1199, %v1355, 0
      %v1361 = vsel %vm1199, %v1356, 0
      %v1364 = vsel %vm1203, %v1348, 0
      %1366 = vmatpush.bf16.msra.mxu0 0
      %1367 = vmatpush.bf16.msra.mxu0 0
      %1368 = vmatpush.bf16.msra.mxu0 0
      %1369 = vmatpush.bf16.msra.mxu0 0
      %1370 = vmatpush.bf16.msra.mxu0 0
      %1371 = vmatpush.bf16.msra.mxu0 0
      %1372 = vmatpush.bf16.msra.mxu0 0
      %1373 = vmatpush.bf16.msra.mxu0 %v1364
      %1374 = vmatmul.bf16.gmra.mxu0 %v1358
      %v1375 = vpop.f32.mrf.mxu0
      %v1376 = vadd.f32 0.0, %v1375
      %v1377 = vpop.f32.mrf.mxu0
      %v1378 = vadd.f32 0.0, %v1377
      %1379 = vmatmul.bf16.gmra.mxu0 %v1361
      %v1380 = vpop.f32.mrf.mxu0
      %v1381 = vadd.f32 0.0, %v1380
      %v1382 = vpop.f32.mrf.mxu0
      %1383 = vdwg.mxu0
      %v1384 = vpack.c.bf16 %v1376, %v1376
      %v1385 = vpack.c.bf16 %v1378, %v1378
      %v1386 = vpack.c.bf16 %v1381, %v1381
      %v1395 = vunpack.c.l.b16 %v1331
      %v1396 = vunpack.c.l.b16 %v1332
      %v1397 = vunpack.c.l.b16 %v1333
      %v1398 = vunpack.c.l.b16 %v1334
      %v1399 = vunpack.c.l.b16 %v1335
      %v1400 = vunpack.c.l.b16 %v1336
      %v1401 = vunpack.c.l.b16 %v1337
      %v1402 = vunpack.c.l.b16 %v1338
      %v1403 = vpack.c.b16 %v1396, %v1395
      %v1404 = vpack.c.b16 %v1398, %v1397
      %v1405 = vpack.c.b16 %v1400, %v1399
      %v1406 = vpack.c.b16 %v1402, %v1401
      %v1412 = vsel %vm751, %v1385, 0
      %1414 = vmatpush.bf16.msra.mxu0 0
      %1415 = vmatpush.bf16.msra.mxu0 0
      %1416 = vmatpush.bf16.msra.mxu0 0
      %1417 = vmatpush.bf16.msra.mxu0 0
      %1418 = vmatpush.bf16.msra.mxu0 %v1406
      %1419 = vmatpush.bf16.msra.mxu0 %v1405
      %1420 = vmatpush.bf16.msra.mxu0 %v1404
      %1421 = vmatpush.bf16.msra.mxu0 %v1403
      %1422 = vmatmul.bf16.gmra.mxu0 %v1412
      %v1423 = vpop.f32.mrf.mxu0
      %v1424 = vadd.f32 0.0, %v1423
      %v1425 = vpop.f32.mrf.mxu0
      %1426 = vdwg.mxu0
      %v1435 = vunpack.c.l.b16 %v1323
      %v1436 = vunpack.c.l.b16 %v1324
      %v1437 = vunpack.c.l.b16 %v1325
      %v1438 = vunpack.c.l.b16 %v1326
      %v1439 = vunpack.c.l.b16 %v1327
      %v1440 = vunpack.c.l.b16 %v1328
      %v1441 = vunpack.c.l.b16 %v1329
      %v1442 = vunpack.c.l.b16 %v1330
      %v1443 = vpack.c.b16 %v1436, %v1435
      %v1444 = vpack.c.b16 %v1438, %v1437
      %v1445 = vpack.c.b16 %v1440, %v1439
      %v1446 = vpack.c.b16 %v1442, %v1441
      %v1452 = vsel %vm751, %v1384, 0
      %1454 = vmatpush.bf16.msra.mxu0 0
      %1455 = vmatpush.bf16.msra.mxu0 0
      %1456 = vmatpush.bf16.msra.mxu0 0
      %1457 = vmatpush.bf16.msra.mxu0 0
      %1458 = vmatpush.bf16.msra.mxu0 %v1446
      %1459 = vmatpush.bf16.msra.mxu0 %v1445
      %1460 = vmatpush.bf16.msra.mxu0 %v1444
      %1461 = vmatpush.bf16.msra.mxu0 %v1443
      %1462 = vmatmul.bf16.gmra.mxu0 %v1452
      %v1463 = vpop.f32.mrf.mxu0
      %v1464 = vadd.f32 %v1424, %v1463
      %v1465 = vpop.f32.mrf.mxu0
      %1466 = vdwg.mxu0
      %v1475 = vunpack.c.l.b16 %v1339
      %v1476 = vunpack.c.l.b16 %v1340
      %v1477 = vunpack.c.l.b16 %v1341
      %v1478 = vunpack.c.l.b16 %v1342
      %v1479 = vunpack.c.l.b16 %v1343
      %v1480 = vunpack.c.l.b16 %v1344
      %v1481 = vunpack.c.l.b16 %v1345
      %v1482 = vunpack.c.l.b16 %v1346
      %v1483 = vpack.c.b16 %v1476, %v1475
      %v1484 = vpack.c.b16 %v1478, %v1477
      %v1485 = vpack.c.b16 %v1480, %v1479
      %v1486 = vpack.c.b16 %v1482, %v1481
      %v1492 = vsel %vm751, %v1386, 0
      %1494 = vmatpush.bf16.msra.mxu0 0
      %1495 = vmatpush.bf16.msra.mxu0 0
      %1496 = vmatpush.bf16.msra.mxu0 0
      %1497 = vmatpush.bf16.msra.mxu0 0
      %1498 = vmatpush.bf16.msra.mxu0 %v1486
      %1499 = vmatpush.bf16.msra.mxu0 %v1485
      %1500 = vmatpush.bf16.msra.mxu0 %v1484
      %1501 = vmatpush.bf16.msra.mxu0 %v1483
      %1502 = vmatmul.bf16.gmra.mxu0 %v1492
      %v1503 = vpop.f32.mrf.mxu0
      %v1504 = vadd.f32 0.0, %v1503
      %v1505 = vpop.f32.mrf.mxu0
      %1506 = vdwg.mxu0
      %v1507 = vadd.f32 %v1464, %v1504
      %v1509 = vperm.slane %v1347, 0
      %v1511 = vadd.f32 %v1507, %v1509
      %v1512 = vmax.f32 %v1511, 0.0
      %v1513 = vld [vmem:[%s14] sm:$0xf]
      %v1514 = vld [vmem:[%s14 + $0x4] sm:$0xf]
      %v1515 = vld [vmem:[%s14 + $0x8] sm:$0xf]
      %v1516 = vld [vmem:[%s14 + $0xc] sm:$0xf]
      %v1517 = vld [vmem:[%s14 + $0x10] sm:$0xf]
      %v1518 = vld [vmem:[%s14 + $0x14] sm:$0xf]
      %v1519 = vld [vmem:[%s15] sm:$0xf]
      %v1520 = vld [vmem:[%s15 + $0x4] sm:$0xf]
      %v1521 = vld [vmem:[%s15 + $0x8] sm:$0xf]
      %v1522 = vld [vmem:[%s15 + $0xc] sm:$0xf]
      %v1523 = vld [vmem:[%s15 + $0x10] sm:$0xf]
      %v1524 = vld [vmem:[%s15 + $0x14] sm:$0xf]
      %v1525 = vld [vmem:[%s15 + $0x18] sm:$0xf]
      %v1526 = vld [vmem:[%s15 + $0x1c] sm:$0xf]
      %v1527 = vld [vmem:[%s15 + $0x20] sm:$0xf]
      %v1528 = vld [vmem:[%s15 + $0x24] sm:$0xf]
      %v1529 = vld [vmem:[%s15 + $0x28] sm:$0xf]
      %v1530 = vld [vmem:[%s15 + $0x2c] sm:$0xf]
      %v1531 = vld [vmem:[%s15 + $0x30] sm:$0xf]
      %v1532 = vld [vmem:[%s15 + $0x34] sm:$0xf]
      %v1533 = vld [vmem:[%s15 + $0x38] sm:$0xf]
      %v1534 = vld [vmem:[%s15 + $0x3c] sm:$0xf]
      %v1535 = vld [vmem:[%s15 + $0x40] sm:$0xf]
      %v1536 = vld [vmem:[%s15 + $0x44] sm:$0xf]
      %v1537 = vld [vmem:[%s15 + $0x48] sm:$0xf]
      %v1538 = vld [vmem:[%s15 + $0x4c] sm:$0xf]
      %v1539 = vld [vmem:[%s15 + $0x50] sm:$0xf]
      %v1540 = vld [vmem:[%s15 + $0x54] sm:$0xf]
      %v1541 = vld [vmem:[%s15 + $0x58] sm:$0xf]
      %v1542 = vld [vmem:[%s15 + $0x5c] sm:$0xf]
      %v1543 = vld [vmem:[%s16] sm:$0x1]
      %v1544 = vpack.c.bf16 %v1512, %v1512
      %v1551 = vunpack.c.l.b16 %v1513
      %v1552 = vunpack.c.l.b16 %v1514
      %v1553 = vunpack.c.l.b16 %v1515
      %v1554 = vunpack.c.l.b16 %v1516
      %v1555 = vunpack.c.l.b16 %v1517
      %v1556 = vunpack.c.l.b16 %v1518
      %v1557 = vpack.c.b16 %v1552, %v1551
      %v1558 = vpack.c.b16 %v1554, %v1553
      %v1559 = vpack.c.b16 %v1556, %v1555
      %v1561 = vsel %vm874, %v1557, 0
      %v1564 = vsel %vm874, %v1558, 0
      %v1567 = vsel %vm874, %v1559, 0
      %v1570 = vsel %vm881, %v1544, 0
      %1572 = vmatpush.bf16.msra.mxu0 0
      %1573 = vmatpush.bf16.msra.mxu0 0
      %1574 = vmatpush.bf16.msra.mxu0 0
      %1575 = vmatpush.bf16.msra.mxu0 0
      %1576 = vmatpush.bf16.msra.mxu0 0
      %1577 = vmatpush.bf16.msra.mxu0 0
      %1578 = vmatpush.bf16.msra.mxu0 0
      %1579 = vmatpush.bf16.msra.mxu0 %v1570
      %1580 = vmatmul.bf16.gmra.mxu0 %v1561
      %v1581 = vpop.f32.mrf.mxu0
      %v1582 = vadd.f32 0.0, %v1581
      %v1583 = vpop.f32.mrf.mxu0
      %v1584 = vadd.f32 0.0, %v1583
      %1585 = vmatmul.bf16.gmra.mxu0 %v1564
      %v1586 = vpop.f32.mrf.mxu0
      %v1587 = vadd.f32 0.0, %v1586
      %v1588 = vpop.f32.mrf.mxu0
      %v1589 = vadd.f32 0.0, %v1588
      %1590 = vmatmul.bf16.gmra.mxu0 %v1567
      %v1591 = vpop.f32.mrf.mxu0
      %v1592 = vadd.f32 0.0, %v1591
      %v1593 = vpop.f32.mrf.mxu0
      %v1594 = vadd.f32 0.0, %v1593
      %1595 = vdwg.mxu0
      %v1596 = vpack.c.bf16 %v1582, %v1582
      %v1597 = vpack.c.bf16 %v1584, %v1584
      %v1598 = vpack.c.bf16 %v1587, %v1587
      %v1599 = vpack.c.bf16 %v1589, %v1589
      %v1600 = vpack.c.bf16 %v1592, %v1592
      %v1601 = vpack.c.bf16 %v1594, %v1594
      %v1604 = vunpack.c.l.b16 %v1598
      %v1605 = vunpack.c.l.b16 %v1599
      %v1606 = vpack.c.b16 %v1605, %v1604
      %v1615 = vunpack.c.l.b16 %v1527
      %v1616 = vunpack.c.l.b16 %v1528
      %v1617 = vunpack.c.l.b16 %v1529
      %v1618 = vunpack.c.l.b16 %v1530
      %v1619 = vunpack.c.l.b16 %v1531
      %v1620 = vunpack.c.l.b16 %v1532
      %v1621 = vunpack.c.l.b16 %v1533
      %v1622 = vunpack.c.l.b16 %v1534
      %v1623 = vpack.c.b16 %v1616, %v1615
      %v1624 = vpack.c.b16 %v1618, %v1617
      %v1625 = vpack.c.b16 %v1620, %v1619
      %v1626 = vpack.c.b16 %v1622, %v1621
      %v1632 = vsel %vm751, %v1606, 0
      %1634 = vmatpush.bf16.msra.mxu0 0
      %1635 = vmatpush.bf16.msra.mxu0 0
      %1636 = vmatpush.bf16.msra.mxu0 0
      %1637 = vmatpush.bf16.msra.mxu0 0
      %1638 = vmatpush.bf16.msra.mxu0 %v1626
      %1639 = vmatpush.bf16.msra.mxu0 %v1625
      %1640 = vmatpush.bf16.msra.mxu0 %v1624
      %1641 = vmatpush.bf16.msra.mxu0 %v1623
      %1642 = vmatmul.bf16.gmra.mxu0 %v1632
      %v1643 = vpop.f32.mrf.mxu0
      %v1644 = vadd.f32 0.0, %v1643
      %v1645 = vpop.f32.mrf.mxu0
      %v1646 = vadd.f32 0.0, %v1645
      %1647 = vdwg.mxu0
      %v1650 = vunpack.c.l.b16 %v1596
      %v1651 = vunpack.c.l.b16 %v1597
      %v1652 = vpack.c.b16 %v1651, %v1650
      %v1661 = vunpack.c.l.b16 %v1519
      %v1662 = vunpack.c.l.b16 %v1520
      %v1663 = vunpack.c.l.b16 %v1521
      %v1664 = vunpack.c.l.b16 %v1522
      %v1665 = vunpack.c.l.b16 %v1523
      %v1666 = vunpack.c.l.b16 %v1524
      %v1667 = vunpack.c.l.b16 %v1525
      %v1668 = vunpack.c.l.b16 %v1526
      %v1669 = vpack.c.b16 %v1662, %v1661
      %v1670 = vpack.c.b16 %v1664, %v1663
      %v1671 = vpack.c.b16 %v1666, %v1665
      %v1672 = vpack.c.b16 %v1668, %v1667
      %v1678 = vsel %vm751, %v1652, 0
      %1680 = vmatpush.bf16.msra.mxu0 0
      %1681 = vmatpush.bf16.msra.mxu0 0
      %1682 = vmatpush.bf16.msra.mxu0 0
      %1683 = vmatpush.bf16.msra.mxu0 0
      %1684 = vmatpush.bf16.msra.mxu0 %v1672
      %1685 = vmatpush.bf16.msra.mxu0 %v1671
      %1686 = vmatpush.bf16.msra.mxu0 %v1670
      %1687 = vmatpush.bf16.msra.mxu0 %v1669
      %1688 = vmatmul.bf16.gmra.mxu0 %v1678
      %v1689 = vpop.f32.mrf.mxu0
      %v1690 = vadd.f32 %v1644, %v1689
      %v1691 = vpop.f32.mrf.mxu0
      %v1692 = vadd.f32 %v1646, %v1691
      %1693 = vdwg.mxu0
      %v1696 = vunpack.c.l.b16 %v1600
      %v1697 = vunpack.c.l.b16 %v1601
      %v1698 = vpack.c.b16 %v1697, %v1696
      %v1707 = vunpack.c.l.b16 %v1535
      %v1708 = vunpack.c.l.b16 %v1536
      %v1709 = vunpack.c.l.b16 %v1537
      %v1710 = vunpack.c.l.b16 %v1538
      %v1711 = vunpack.c.l.b16 %v1539
      %v1712 = vunpack.c.l.b16 %v1540
      %v1713 = vunpack.c.l.b16 %v1541
      %v1714 = vunpack.c.l.b16 %v1542
      %v1715 = vpack.c.b16 %v1708, %v1707
      %v1716 = vpack.c.b16 %v1710, %v1709
      %v1717 = vpack.c.b16 %v1712, %v1711
      %v1718 = vpack.c.b16 %v1714, %v1713
      %v1724 = vsel %vm751, %v1698, 0
      %1726 = vmatpush.bf16.msra.mxu0 0
      %1727 = vmatpush.bf16.msra.mxu0 0
      %1728 = vmatpush.bf16.msra.mxu0 0
      %1729 = vmatpush.bf16.msra.mxu0 0
      %1730 = vmatpush.bf16.msra.mxu0 %v1718
      %1731 = vmatpush.bf16.msra.mxu0 %v1717
      %1732 = vmatpush.bf16.msra.mxu0 %v1716
      %1733 = vmatpush.bf16.msra.mxu0 %v1715
      %1734 = vmatmul.bf16.gmra.mxu0 %v1724
      %v1735 = vpop.f32.mrf.mxu0
      %v1736 = vadd.f32 0.0, %v1735
      %v1737 = vpop.f32.mrf.mxu0
      %v1738 = vadd.f32 0.0, %v1737
      %1739 = vdwg.mxu0
      %v1740 = vadd.f32 %v1690, %v1736
      %v1741 = vadd.f32 %v1692, %v1738
      %v1743 = vperm.slane %v1543, 0
      %v1745 = vadd.f32 %v1740, %v1743
      %v1746 = vadd.f32 %v1741, %v1743
      %1747 = vst.msk [vmem:[%s649] sm:$0xff] %vm751, %v1745
      %1748 = vst.msk [vmem:[%s649 + $0x8] sm:$0xff] %vm751, %v1746
      %p1749 = scmp.lt.s32.totalorder %s31, 1
      %s1750 = scalar_select %p1749, %s31, 1
      %s1751 = smul.addr %s1750, 2
      %s1752 = smul.addr %s1751, 8
      %s1753 = scalar_lea.vmem %s17, %s1752
      %p1754 = scmp.lt.s32.totalorder %s31, 1
      %s1755 = scalar_select %p1754, %s31, 1
      %s1756 = smul.addr %s1755, 8
      %s1757 = scalar_lea.vmem %s18, %s1756
      %p1758 = scmp.lt.s32.totalorder %s31, 1
      %s1759 = scalar_select %p1758, %s31, 1
      %s1760 = smul.addr %s1759, 4
      %s1761 = scalar_lea.vmem %s19, %s1760
      // Predicated region
      $region89: #{hourglass1_forward.1} parent=87 // pred_check
        %p1762 = pneg %p421
      $region90: #{hourglass1_forward.1} parent=87 // pred_check_branch
        %1764 = sbr.rel (%p1762) target = $region92
      $region91: #{hourglass1_forward.1} parent=87 // pred_region
        _
      $region92: #{hourglass1_forward.1} parent=87 // pred_fallthru
        _
      // Predicated region
      $region93: #{hourglass1_forward.1} parent=87 // pred_check
        %p1765 = pneg %p447
      $region94: #{hourglass1_forward.1} parent=87 // pred_check_branch
        %1767 = sbr.rel (%p1765) target = $region96
      $region95: #{hourglass1_forward.1} parent=87 // pred_region
        _
      $region96: #{hourglass1_forward.1} parent=87 // pred_fallthru
        _
      // Predicated region
      $region97: #{hourglass1_forward.1} parent=87 // pred_check
        %p1768 = pneg %p473
      $region98: #{hourglass1_forward.1} parent=87 // pred_check_branch
        %1770 = sbr.rel (%p1768) target = $region100
      $region99: #{hourglass1_forward.1} parent=87 // pred_region
        _
      $region100: #{hourglass1_forward.1} parent=87 // pred_fallthru
        _
    $region88: #{hourglass1_forward.1} parent=5 // pred_fallthru
      _
    %p1771 = scmp.le.s32.totalorder 2, %s26
    // Predicated region
    $region101: #{hourglass1_forward.1} parent=5 // pred_check
      %p1772 = pneg %p1771
    $region102: #{hourglass1_forward.1} parent=5 // pred_check_branch
      %1774 = sbr.rel (%p1772) target = $region104
    $region103: #{hourglass1_forward.1} parent=5 // pred_region
      %s1775 = ssub.s32 %s26, 2
      // Predicated region
      $region105: #{hourglass1_forward.1} parent=103 // pred_check
        %p1776 = pneg %p427
      $region106: #{hourglass1_forward.1} parent=103 // pred_check_branch
        %1778 = sbr.rel (%p1776) target = $region108
      $region107: #{hourglass1_forward.1} parent=103 // pred_region
        %p1779 = scmp.lt.s32.totalorder %s32, 1
        %s1780 = scalar_select %p1779, %s32, 1
        %s1781 = smul.addr %s1780, 2
        %s1782 = smul.addr %s1781, 8
        %s1783 = scalar_lea.vmem %s17, %s1782
      $region108: #{hourglass1_forward.1} parent=103 // pred_fallthru
        _
      // Predicated region
      $region109: #{hourglass1_forward.1} parent=103 // pred_check
        %p1784 = pneg %p453
      $region110: #{hourglass1_forward.1} parent=103 // pred_check_branch
        %1786 = sbr.rel (%p1784) target = $region112
      $region111: #{hourglass1_forward.1} parent=103 // pred_region
        %p1787 = scmp.lt.s32.totalorder %s32, 1
        %s1788 = scalar_select %p1787, %s32, 1
        %s1789 = smul.addr %s1788, 8
        %s1790 = scalar_lea.vmem %s18, %s1789
      $region112: #{hourglass1_forward.1} parent=103 // pred_fallthru
        _
      // Predicated region
      $region113: #{hourglass1_forward.1} parent=103 // pred_check
        %p1791 = pneg %p479
      $region114: #{hourglass1_forward.1} parent=103 // pred_check_branch
        %1793 = sbr.rel (%p1791) target = $region116
      $region115: #{hourglass1_forward.1} parent=103 // pred_region
        %p1794 = scmp.lt.s32.totalorder %s32, 1
        %s1795 = scalar_select %p1794, %s32, 1
        %s1796 = smul.addr %s1795, 4
        %s1797 = scalar_lea.vmem %s19, %s1796
      $region116: #{hourglass1_forward.1} parent=103 // pred_fallthru
        _
    $region104: #{hourglass1_forward.1} parent=5 // pred_fallthru
      _
  $region6: #{hourglass1_forward.1} parent=0 // loop_footer
    %s30 = sadd.s32 1, %s26
  $region7: #{hourglass1_forward.1} parent=0 // loop_footer_branch
    %25 = sbr.rel target = $region3
  $region8: #{hourglass1_forward.1} parent=0 // loop_exit
    _

</llo_original>
